<compile_context>
chip_gen: v6e
topology: v6e:2x2x1
jax: 0.10.0
libtpu: 0.0.40
codegen_flags: <defaults>
</compile_context>

<pallas_src>
import functools

import jax
import jax.numpy as jnp
import numpy as np
from jax import lax
from jax.experimental import pallas as pl
from jax.experimental.pallas import tpu as pltpu


def _cross_attn_kernel(x_ref, k_ref, v_ref, wq_ref, wp_ref, bp_ref,
                       o_ref, acc_ref, *, num_heads, head_dim):
    # x_ref : (1, TQ, C)  query activations (compute dtype)
    # k_ref : (1, M, C)   pre-projected keys   (compute dtype)
    # v_ref : (1, M, C)   pre-projected values (compute dtype)
    # wq_ref: (C, C)      Wq^T with softmax scale folded in (compute dtype)
    # wp_ref: (C, C)      Wproj^T (compute dtype)
    # bp_ref: (1, C)      proj bias (f32)
    # o_ref : (1, TQ, C)  output tile
    # acc_ref: (TQ, C)    f32 VMEM accumulator for the projected output
    x = x_ref[0]                        # (TQ, C)
    k = k_ref[0]                        # (M, C)
    v = v_ref[0]                        # (M, C)
    cdt = x.dtype                       # MXU input dtype (bf16 on v6e/v7x)

    # Q projection (MXU, f32 accumulation). Scale already folded into Wq.
    q = jnp.dot(x, wq_ref[...], preferred_element_type=jnp.float32).astype(cdt)

    # Output accumulator starts at the projection bias (broadcast over rows).
    acc_ref[...] = jnp.broadcast_to(bp_ref[...], acc_ref.shape)

    # Per-head attention fused with the per-head rows of the output projection,
    # so every accumulator write is a full-lane (TQ, C) store.
    # TODO(synk): pack 128/hd (v5e) or 256/hd (v6e/v7x) heads per MXU call and
    # tile the context axis (online softmax over M blocks) for long context.
    for h in range(num_heads):
        lo = h * head_dim
        hi = lo + head_dim
        qh = q[:, lo:hi]                # (TQ, hd)
        kh = k[:, lo:hi]                # (M,  hd)
        vh = v[:, lo:hi]                # (M,  hd)

        # q @ k^T without materializing a transpose: contract head_dim dims.
        s = lax.dot_general(qh, kh, (((1,), (1,)), ((), ())),
                            preferred_element_type=jnp.float32)     # (TQ, M)
        s = s - jnp.max(s, axis=-1, keepdims=True)                  # f32 stats
        p = jnp.exp(s)
        l = jnp.sum(p, axis=-1, keepdims=True)                      # (TQ, 1)

        # Un-normalized PV matmul, then normalize the small (TQ, hd) result
        # instead of the (TQ, M) probability matrix. Exact reciprocal.
        oh = jnp.dot(p.astype(cdt), vh, preferred_element_type=jnp.float32)
        oh = oh * pl.reciprocal(l, approx=False)

        # Fused per-head output projection:  sum_h  o_h @ Wp[h_rows, :].
        acc_ref[...] += jnp.dot(oh.astype(cdt), wp_ref[lo:hi, :],
                                preferred_element_type=jnp.float32)

    o_ref[0] = acc_ref[...].astype(o_ref.dtype)


def _round_up(x, m):
    return ((x + m - 1) // m) * m


def _vmem_capacity_bytes():
    try:
        return int(pltpu.get_tpu_info().vmem_capacity_bytes)
    except Exception:
        return 128 * 1024 * 1024   # v5e / v6e default


def _spec(shape, index_map, *, single_buffer=False):
    """BlockSpec; request single-buffering when the block rarely changes."""
    if single_buffer:
        try:
            return pl.BlockSpec(shape, index_map, pipeline_mode=pl.Buffered(1))
        except TypeError:  # older BlockSpec without pipeline_mode kwarg
            pass
    return pl.BlockSpec(shape, index_map)


def cross_attention(x, context, wq_t, wkv_t, wp_t, bp, *, num_heads,
                    compute_dtype=None, max_tq=None):
    """x: (B, N, C), context: (B, M, C). Weights pre-transposed to (in, out)."""
    B, N, C = x.shape
    M = context.shape[1]
    assert C % num_heads == 0, "dim must be divisible by num_heads"
    head_dim = C // num_heads
    scale = head_dim ** (-0.5)

    out_dtype = x.dtype
    cdt = jnp.dtype(compute_dtype) if compute_dtype is not None else jnp.dtype(x.dtype)
    csz = cdt.itemsize

    # ---- Host-side prep -----------------------------------------------------
    # Fold the softmax scale into Wq, split the fused KV weight, and cast
    # weights + activations to the MXU compute dtype.
    wq_c = (wq_t * scale).astype(cdt)
    wp_c = wp_t.astype(cdt)
    bp_c = bp.reshape(1, C).astype(jnp.float32)
    x_c = x.astype(cdt)

    # K / V projections hoisted out of the kernel: computed once per batch as
    # plain XLA GEMMs so they are never recomputed per query tile.
    ctx_c = context.astype(cdt)
    k = jnp.einsum("bmc,cd->bmd", ctx_c, wkv_t[:, :C].astype(cdt),
                   preferred_element_type=jnp.float32).astype(cdt)
    v = jnp.einsum("bmc,cd->bmd", ctx_c, wkv_t[:, C:].astype(cdt),
                   preferred_element_type=jnp.float32).astype(cdt)

    # ---- Generation-aware budgets -------------------------------------------
    vmem_cap = _vmem_capacity_bytes()
    small_vmem = vmem_cap <= 64 * 1024 * 1024          # v7x: 64 MiB / TC
    vmem_limit = max(32 * 1024 * 1024,
                     min(int(0.75 * vmem_cap), 100 * 1024 * 1024))
    if max_tq is None:
        max_tq = 256 if small_vmem else 512

    # ---- Query tiling (pad N so every tile is full; no unbounded fallback) --
    tq = min(max_tq, _round_up(N, 8))
    n_pad = _round_up(N, tq)
    if n_pad != N:
        x_c = jnp.pad(x_c, ((0, 0), (0, n_pad - N), (0, 0)))
    grid = (B, n_pad // tq)

    # Single-buffer K/V on small-VMEM parts when they are large: their block
    # only changes once per batch, so the lost overlap is amortized.
    kv_single = small_vmem and (M * C * csz >= (4 << 20))

    kernel = functools.partial(_cross_attn_kernel,
                               num_heads=num_heads, head_dim=head_dim)

    cost = pl.CostEstimate(
        flops=int(4 * B * (n_pad * C * C + n_pad * M * C)),
        transcendentals=int(B * num_heads * n_pad * M),
        bytes_accessed=int(csz * (2 * B * n_pad * C + 2 * B * M * C + 2 * C * C)
                           + 4 * C),
    )

    out = pl.pallas_call(
        kernel,
        out_shape=jax.ShapeDtypeStruct((B, n_pad, C), out_dtype),
        grid_spec=pltpu.PrefetchScalarGridSpec(
            num_scalar_prefetch=0,
            grid=grid,
            in_specs=[
                pl.BlockSpec((1, tq, C), lambda b, i: (b, i, 0)),        # x tile
                _spec((1, M, C), lambda b, i: (b, 0, 0),
                      single_buffer=kv_single),                          # K
                _spec((1, M, C), lambda b, i: (b, 0, 0),
                      single_buffer=kv_single),                          # V
                _spec((C, C), lambda b, i: (0, 0), single_buffer=True),  # Wq^T * scale
                _spec((C, C), lambda b, i: (0, 0), single_buffer=True),  # Wproj^T
                _spec((1, C), lambda b, i: (0, 0), single_buffer=True),  # bproj
            ],
            out_specs=pl.BlockSpec((1, tq, C), lambda b, i: (b, i, 0)),
            scratch_shapes=[pltpu.VMEM((tq, C), jnp.float32)],
        ),
        compiler_params=pltpu.CompilerParams(
            dimension_semantics=("parallel", "parallel"),
            vmem_limit_bytes=vmem_limit,
        ),
        cost_estimate=cost,
    )(x_c, k, v, wq_c, wp_c, bp_c)

    if n_pad != N:
        out = out[:, :N, :]
    return out


def cross_attention_ref(x, context, wq_t, wkv_t, wp_t, bp, *, num_heads):
    """Pure-JAX reference mirroring the PyTorch forward (f32)."""
    B, N, C = x.shape
    M = context.shape[1]
    hd = C // num_heads
    scale = hd ** (-0.5)
    q = (x @ wq_t).reshape(B, N, num_heads, hd).transpose(0, 2, 1, 3)      # (B,H,N,hd)
    kv = (context @ wkv_t).reshape(B, M, 2, num_heads, hd).transpose(2, 0, 3, 1, 4)
    k, v = kv[0], kv[1]                                                    # (B,H,M,hd)
    attn = jnp.einsum("bhnd,bhmd->bhnm", q * scale, k)
    attn = jax.nn.softmax(attn, axis=-1)
    o = jnp.einsum("bhnm,bhmd->bhnd", attn, v)
    o = o.transpose(0, 2, 1, 3).reshape(B, N, C)
    return o @ wp_t + bp


if __name__ == "__main__":
    # ---- Small, module-consistent shapes; f32 compute path ------------------
    B, N, M, C, H = 2, 16, 8, 32, 4
    key = jax.random.PRNGKey(0)
    kx, kc, kq, kkv, kp, kb = jax.random.split(key, 6)

    x = jax.random.normal(kx, (B, N, C), dtype=jnp.float32)
    context = jax.random.normal(kc, (B, M, C), dtype=jnp.float32)
    # PyTorch Linear weight is (out, in); we store the transposed (in, out) form.
    wq_t = 0.02 * jax.random.normal(kq, (C, C), dtype=jnp.float32)
    wkv_t = 0.02 * jax.random.normal(kkv, (C, 2 * C), dtype=jnp.float32)
    wp_t = 0.02 * jax.random.normal(kp, (C, C), dtype=jnp.float32)
    bp = 0.02 * jax.random.normal(kb, (C,), dtype=jnp.float32)

    out = cross_attention(x, context, wq_t, wkv_t, wp_t, bp, num_heads=H)
    out = jax.block_until_ready(out)
    ref = cross_attention_ref(x, context, wq_t, wkv_t, wp_t, bp, num_heads=H)
    np.testing.assert_allclose(np.asarray(out), np.asarray(ref),
                               rtol=1e-2, atol=1e-3)

    # ---- bf16 compute path (lane-aligned head_dim = 128), loose tolerance ---
    B2, N2, M2, C2, H2 = 1, 64, 32, 256, 2
    k2 = jax.random.split(jax.random.PRNGKey(1), 6)
    x2 = jax.random.normal(k2[0], (B2, N2, C2), dtype=jnp.float32)
    ctx2 = jax.random.normal(k2[1], (B2, M2, C2), dtype=jnp.float32)
    wq2 = 0.02 * jax.random.normal(k2[2], (C2, C2), dtype=jnp.float32)
    wkv2 = 0.02 * jax.random.normal(k2[3], (C2, 2 * C2), dtype=jnp.float32)
    wp2 = 0.02 * jax.random.normal(k2[4], (C2, C2), dtype=jnp.float32)
    bp2 = 0.02 * jax.random.normal(k2[5], (C2,), dtype=jnp.float32)

    out2 = cross_attention(x2, ctx2, wq2, wkv2, wp2, bp2, num_heads=H2,
                           compute_dtype=jnp.bfloat16)
    out2 = jax.block_until_ready(out2)
    ref2 = cross_attention_ref(x2, ctx2, wq2, wkv2, wp2, bp2, num_heads=H2)
    np.testing.assert_allclose(np.asarray(out2), np.asarray(ref2),
                               rtol=5e-2, atol=2e-2)

    print("KERNEL_OK")
</pallas_src>

<mosaic_0001>
module attributes {stable_mosaic.version = 11 : i64} {
  func.func @_cross_attn_kernel(%arg0: i32, %arg1: i32, %arg2: memref<1x16x32xf32, #tpu.memory_space<vmem>>, %arg3: memref<1x8x32xf32, #tpu.memory_space<vmem>>, %arg4: memref<1x8x32xf32, #tpu.memory_space<vmem>>, %arg5: memref<32x32xf32, #tpu.memory_space<vmem>>, %arg6: memref<32x32xf32, #tpu.memory_space<vmem>>, %arg7: memref<1x32xf32, #tpu.memory_space<vmem>>, %arg8: memref<1x16x32xf32, #tpu.memory_space<vmem>>, %arg9: memref<16x32xf32, #tpu.memory_space<vmem>>) attributes {dimension_semantics = [#tpu.dimension_semantics<parallel>, #tpu.dimension_semantics<parallel>], iteration_bounds = array<i64: 2, 1>, scalar_prefetch = 0 : i64, scratch_operands = 1 : i64, tpu.core_type = #tpu.core_type<tc>, window_params = [{transform_indices = @transform_0, window_bounds = array<i64: 1, 16, 32>}, {transform_indices = @transform_1, window_bounds = array<i64: 1, 8, 32>}, {transform_indices = @transform_2, window_bounds = array<i64: 1, 8, 32>}, {pipeline_mode = #tpu.pipeline_mode<synchronous>, transform_indices = @transform_3, window_bounds = array<i64: 32, 32>}, {pipeline_mode = #tpu.pipeline_mode<synchronous>, transform_indices = @transform_4, window_bounds = array<i64: 32, 32>}, {pipeline_mode = #tpu.pipeline_mode<synchronous>, transform_indices = @transform_5, window_bounds = array<i64: 1, 32>}, {transform_indices = @transform_6, window_bounds = array<i64: 1, 16, 32>}]} {
    %c0 = arith.constant 0 : index
    %c0_0 = arith.constant 0 : index
    %c0_1 = arith.constant 0 : index
    %0 = vector.load %arg2[%c0, %c0_0, %c0_1] : memref<1x16x32xf32, #tpu.memory_space<vmem>>, vector<1x16x32xf32>
    %1 = vector.shape_cast %0 : vector<1x16x32xf32> to vector<16x32xf32>
    %c0_2 = arith.constant 0 : index
    %c0_3 = arith.constant 0 : index
    %c0_4 = arith.constant 0 : index
    %2 = vector.load %arg3[%c0_2, %c0_3, %c0_4] : memref<1x8x32xf32, #tpu.memory_space<vmem>>, vector<1x8x32xf32>
    %3 = vector.shape_cast %2 : vector<1x8x32xf32> to vector<8x32xf32>
    %c0_5 = arith.constant 0 : index
    %c0_6 = arith.constant 0 : index
    %c0_7 = arith.constant 0 : index
    %4 = vector.load %arg4[%c0_5, %c0_6, %c0_7] : memref<1x8x32xf32, #tpu.memory_space<vmem>>, vector<1x8x32xf32>
    %5 = vector.shape_cast %4 : vector<1x8x32xf32> to vector<8x32xf32>
    %c0_8 = arith.constant 0 : index
    %c0_9 = arith.constant 0 : index
    %6 = vector.load %arg5[%c0_8, %c0_9] : memref<32x32xf32, #tpu.memory_space<vmem>>, vector<32x32xf32>
    %cst = arith.constant dense<0.000000e+00> : vector<16x32xf32>
    %7 = tpu.matmul %1, %6, %cst {dimension_numbers = #tpu.dot_dimension_numbers<[1], [0], [0], [1], [0, 0, 1, 1], [], []>} : vector<16x32xf32>, vector<32x32xf32>, vector<16x32xf32> -> vector<16x32xf32>
    %c0_10 = arith.constant 0 : index
    %c0_11 = arith.constant 0 : index
    %8 = vector.load %arg7[%c0_10, %c0_11] : memref<1x32xf32, #tpu.memory_space<vmem>>, vector<1x32xf32>
    %9 = vector.shape_cast %8 : vector<1x32xf32> to vector<1x32xf32>
    %10 = vector.broadcast %9 : vector<1x32xf32> to vector<16x32xf32>
    %c0_12 = arith.constant 0 : index
    %c0_13 = arith.constant 0 : index
    %11 = vector.load %arg9[%c0_12, %c0_13] : memref<16x32xf32, #tpu.memory_space<vmem>>, vector<16x32xf32>
    tpu.vector_store %arg9[%c0_12, %c0_13], %10 {strides = array<i32>} : memref<16x32xf32, #tpu.memory_space<vmem>>, vector<16x32xf32>,
    %12 = vector.extract_strided_slice %7 {offsets = [0, 0], sizes = [16, 8], strides = [1, 1]} : vector<16x32xf32> to vector<16x8xf32>
    %13 = vector.extract_strided_slice %3 {offsets = [0, 0], sizes = [8, 8], strides = [1, 1]} : vector<8x32xf32> to vector<8x8xf32>
    %14 = vector.extract_strided_slice %5 {offsets = [0, 0], sizes = [8, 8], strides = [1, 1]} : vector<8x32xf32> to vector<8x8xf32>
    %cst_14 = arith.constant dense<0.000000e+00> : vector<16x8xf32>
    %15 = tpu.matmul %12, %13, %cst_14 {dimension_numbers = #tpu.dot_dimension_numbers<[1], [1], [0], [0], [0, 0, 1, 0], [], []>} : vector<16x8xf32>, vector<8x8xf32>, vector<16x8xf32> -> vector<16x8xf32>
    %cst_15 = arith.constant dense<0xFF800000> : vector<16xf32>
    %16 = vector.multi_reduction <maximumf>, %15, %cst_15 [1] : vector<16x8xf32> to vector<16xf32>
    %17 = vector.shape_cast %16 : vector<16xf32> to vector<16x1xf32>
    %18 = vector.broadcast %17 : vector<16x1xf32> to vector<16x8xf32>
    %19 = arith.subf %15, %18 : vector<16x8xf32>
    %20 = math.exp %19 : vector<16x8xf32>
    %cst_16 = arith.constant dense<0.000000e+00> : vector<16xf32>
    %21 = vector.multi_reduction <add>, %20, %cst_16 [1] : vector<16x8xf32> to vector<16xf32>
    %22 = vector.shape_cast %21 : vector<16xf32> to vector<16x1xf32>
    %cst_17 = arith.constant dense<0.000000e+00> : vector<16x8xf32>
    %23 = tpu.matmul %20, %14, %cst_17 {dimension_numbers = #tpu.dot_dimension_numbers<[1], [0], [0], [1], [0, 0, 1, 1], [], []>} : vector<16x8xf32>, vector<8x8xf32>, vector<16x8xf32> -> vector<16x8xf32>
    %24 = tpu.reciprocal %22 : vector<16x1xf32> -> vector<16x1xf32>
    %25 = vector.broadcast %24 : vector<16x1xf32> to vector<16x8xf32>
    %26 = arith.mulf %23, %25 : vector<16x8xf32>
    %c0_18 = arith.constant 0 : index
    %c0_19 = arith.constant 0 : index
    %27 = vector.load %arg9[%c0_18, %c0_19] : memref<16x32xf32, #tpu.memory_space<vmem>>, vector<16x32xf32>
    %c0_20 = arith.constant 0 : index
    %c0_21 = arith.constant 0 : index
    %28 = vector.load %arg6[%c0_20, %c0_21] : memref<32x32xf32, #tpu.memory_space<vmem>>, vector<8x32xf32>
    %cst_22 = arith.constant dense<0.000000e+00> : vector<16x32xf32>
    %29 = tpu.matmul %26, %28, %cst_22 {dimension_numbers = #tpu.dot_dimension_numbers<[1], [0], [0], [1], [0, 0, 1, 1], [], []>} : vector<16x8xf32>, vector<8x32xf32>, vector<16x32xf32> -> vector<16x32xf32>
    %30 = arith.addf %27, %29 : vector<16x32xf32>
    %c0_23 = arith.constant 0 : index
    %c0_24 = arith.constant 0 : index
    %31 = vector.load %arg9[%c0_23, %c0_24] : memref<16x32xf32, #tpu.memory_space<vmem>>, vector<16x32xf32>
    tpu.vector_store %arg9[%c0_23, %c0_24], %30 {strides = array<i32>} : memref<16x32xf32, #tpu.memory_space<vmem>>, vector<16x32xf32>,
    %32 = vector.extract_strided_slice %7 {offsets = [0, 8], sizes = [16, 8], strides = [1, 1]} : vector<16x32xf32> to vector<16x8xf32>
    %33 = vector.extract_strided_slice %3 {offsets = [0, 8], sizes = [8, 8], strides = [1, 1]} : vector<8x32xf32> to vector<8x8xf32>
    %34 = vector.extract_strided_slice %5 {offsets = [0, 8], sizes = [8, 8], strides = [1, 1]} : vector<8x32xf32> to vector<8x8xf32>
    %cst_25 = arith.constant dense<0.000000e+00> : vector<16x8xf32>
    %35 = tpu.matmul %32, %33, %cst_25 {dimension_numbers = #tpu.dot_dimension_numbers<[1], [1], [0], [0], [0, 0, 1, 0], [], []>} : vector<16x8xf32>, vector<8x8xf32>, vector<16x8xf32> -> vector<16x8xf32>
    %cst_26 = arith.constant dense<0xFF800000> : vector<16xf32>
    %36 = vector.multi_reduction <maximumf>, %35, %cst_26 [1] : vector<16x8xf32> to vector<16xf32>
    %37 = vector.shape_cast %36 : vector<16xf32> to vector<16x1xf32>
    %38 = vector.broadcast %37 : vector<16x1xf32> to vector<16x8xf32>
    %39 = arith.subf %35, %38 : vector<16x8xf32>
    %40 = math.exp %39 : vector<16x8xf32>
    %cst_27 = arith.constant dense<0.000000e+00> : vector<16xf32>
    %41 = vector.multi_reduction <add>, %40, %cst_27 [1] : vector<16x8xf32> to vector<16xf32>
    %42 = vector.shape_cast %41 : vector<16xf32> to vector<16x1xf32>
    %cst_28 = arith.constant dense<0.000000e+00> : vector<16x8xf32>
    %43 = tpu.matmul %40, %34, %cst_28 {dimension_numbers = #tpu.dot_dimension_numbers<[1], [0], [0], [1], [0, 0, 1, 1], [], []>} : vector<16x8xf32>, vector<8x8xf32>, vector<16x8xf32> -> vector<16x8xf32>
    %44 = tpu.reciprocal %42 : vector<16x1xf32> -> vector<16x1xf32>
    %45 = vector.broadcast %44 : vector<16x1xf32> to vector<16x8xf32>
    %46 = arith.mulf %43, %45 : vector<16x8xf32>
    %c0_29 = arith.constant 0 : index
    %c0_30 = arith.constant 0 : index
    %47 = vector.load %arg9[%c0_29, %c0_30] : memref<16x32xf32, #tpu.memory_space<vmem>>, vector<16x32xf32>
    %c8 = arith.constant 8 : index
    %c0_31 = arith.constant 0 : index
    %48 = vector.load %arg6[%c8, %c0_31] : memref<32x32xf32, #tpu.memory_space<vmem>>, vector<8x32xf32>
    %cst_32 = arith.constant dense<0.000000e+00> : vector<16x32xf32>
    %49 = tpu.matmul %46, %48, %cst_32 {dimension_numbers = #tpu.dot_dimension_numbers<[1], [0], [0], [1], [0, 0, 1, 1], [], []>} : vector<16x8xf32>, vector<8x32xf32>, vector<16x32xf32> -> vector<16x32xf32>
    %50 = arith.addf %47, %49 : vector<16x32xf32>
    %c0_33 = arith.constant 0 : index
    %c0_34 = arith.constant 0 : index
    %51 = vector.load %arg9[%c0_33, %c0_34] : memref<16x32xf32, #tpu.memory_space<vmem>>, vector<16x32xf32>
    tpu.vector_store %arg9[%c0_33, %c0_34], %50 {strides = array<i32>} : memref<16x32xf32, #tpu.memory_space<vmem>>, vector<16x32xf32>,
    %52 = vector.extract_strided_slice %7 {offsets = [0, 16], sizes = [16, 8], strides = [1, 1]} : vector<16x32xf32> to vector<16x8xf32>
    %53 = vector.extract_strided_slice %3 {offsets = [0, 16], sizes = [8, 8], strides = [1, 1]} : vector<8x32xf32> to vector<8x8xf32>
    %54 = vector.extract_strided_slice %5 {offsets = [0, 16], sizes = [8, 8], strides = [1, 1]} : vector<8x32xf32> to vector<8x8xf32>
    %cst_35 = arith.constant dense<0.000000e+00> : vector<16x8xf32>
    %55 = tpu.matmul %52, %53, %cst_35 {dimension_numbers = #tpu.dot_dimension_numbers<[1], [1], [0], [0], [0, 0, 1, 0], [], []>} : vector<16x8xf32>, vector<8x8xf32>, vector<16x8xf32> -> vector<16x8xf32>
    %cst_36 = arith.constant dense<0xFF800000> : vector<16xf32>
    %56 = vector.multi_reduction <maximumf>, %55, %cst_36 [1] : vector<16x8xf32> to vector<16xf32>
    %57 = vector.shape_cast %56 : vector<16xf32> to vector<16x1xf32>
    %58 = vector.broadcast %57 : vector<16x1xf32> to vector<16x8xf32>
    %59 = arith.subf %55, %58 : vector<16x8xf32>
    %60 = math.exp %59 : vector<16x8xf32>
    %cst_37 = arith.constant dense<0.000000e+00> : vector<16xf32>
    %61 = vector.multi_reduction <add>, %60, %cst_37 [1] : vector<16x8xf32> to vector<16xf32>
    %62 = vector.shape_cast %61 : vector<16xf32> to vector<16x1xf32>
    %cst_38 = arith.constant dense<0.000000e+00> : vector<16x8xf32>
    %63 = tpu.matmul %60, %54, %cst_38 {dimension_numbers = #tpu.dot_dimension_numbers<[1], [0], [0], [1], [0, 0, 1, 1], [], []>} : vector<16x8xf32>, vector<8x8xf32>, vector<16x8xf32> -> vector<16x8xf32>
    %64 = tpu.reciprocal %62 : vector<16x1xf32> -> vector<16x1xf32>
    %65 = vector.broadcast %64 : vector<16x1xf32> to vector<16x8xf32>
    %66 = arith.mulf %63, %65 : vector<16x8xf32>
    %c0_39 = arith.constant 0 : index
    %c0_40 = arith.constant 0 : index
    %67 = vector.load %arg9[%c0_39, %c0_40] : memref<16x32xf32, #tpu.memory_space<vmem>>, vector<16x32xf32>
    %c16 = arith.constant 16 : index
    %c0_41 = arith.constant 0 : index
    %68 = vector.load %arg6[%c16, %c0_41] : memref<32x32xf32, #tpu.memory_space<vmem>>, vector<8x32xf32>
    %cst_42 = arith.constant dense<0.000000e+00> : vector<16x32xf32>
    %69 = tpu.matmul %66, %68, %cst_42 {dimension_numbers = #tpu.dot_dimension_numbers<[1], [0], [0], [1], [0, 0, 1, 1], [], []>} : vector<16x8xf32>, vector<8x32xf32>, vector<16x32xf32> -> vector<16x32xf32>
    %70 = arith.addf %67, %69 : vector<16x32xf32>
    %c0_43 = arith.constant 0 : index
    %c0_44 = arith.constant 0 : index
    %71 = vector.load %arg9[%c0_43, %c0_44] : memref<16x32xf32, #tpu.memory_space<vmem>>, vector<16x32xf32>
    tpu.vector_store %arg9[%c0_43, %c0_44], %70 {strides = array<i32>} : memref<16x32xf32, #tpu.memory_space<vmem>>, vector<16x32xf32>,
    %72 = vector.extract_strided_slice %7 {offsets = [0, 24], sizes = [16, 8], strides = [1, 1]} : vector<16x32xf32> to vector<16x8xf32>
    %73 = vector.extract_strided_slice %3 {offsets = [0, 24], sizes = [8, 8], strides = [1, 1]} : vector<8x32xf32> to vector<8x8xf32>
    %74 = vector.extract_strided_slice %5 {offsets = [0, 24], sizes = [8, 8], strides = [1, 1]} : vector<8x32xf32> to vector<8x8xf32>
    %cst_45 = arith.constant dense<0.000000e+00> : vector<16x8xf32>
    %75 = tpu.matmul %72, %73, %cst_45 {dimension_numbers = #tpu.dot_dimension_numbers<[1], [1], [0], [0], [0, 0, 1, 0], [], []>} : vector<16x8xf32>, vector<8x8xf32>, vector<16x8xf32> -> vector<16x8xf32>
    %cst_46 = arith.constant dense<0xFF800000> : vector<16xf32>
    %76 = vector.multi_reduction <maximumf>, %75, %cst_46 [1] : vector<16x8xf32> to vector<16xf32>
    %77 = vector.shape_cast %76 : vector<16xf32> to vector<16x1xf32>
    %78 = vector.broadcast %77 : vector<16x1xf32> to vector<16x8xf32>
    %79 = arith.subf %75, %78 : vector<16x8xf32>
    %80 = math.exp %79 : vector<16x8xf32>
    %cst_47 = arith.constant dense<0.000000e+00> : vector<16xf32>
    %81 = vector.multi_reduction <add>, %80, %cst_47 [1] : vector<16x8xf32> to vector<16xf32>
    %82 = vector.shape_cast %81 : vector<16xf32> to vector<16x1xf32>
    %cst_48 = arith.constant dense<0.000000e+00> : vector<16x8xf32>
    %83 = tpu.matmul %80, %74, %cst_48 {dimension_numbers = #tpu.dot_dimension_numbers<[1], [0], [0], [1], [0, 0, 1, 1], [], []>} : vector<16x8xf32>, vector<8x8xf32>, vector<16x8xf32> -> vector<16x8xf32>
    %84 = tpu.reciprocal %82 : vector<16x1xf32> -> vector<16x1xf32>
    %85 = vector.broadcast %84 : vector<16x1xf32> to vector<16x8xf32>
    %86 = arith.mulf %83, %85 : vector<16x8xf32>
    %c0_49 = arith.constant 0 : index
    %c0_50 = arith.constant 0 : index
    %87 = vector.load %arg9[%c0_49, %c0_50] : memref<16x32xf32, #tpu.memory_space<vmem>>, vector<16x32xf32>
    %c24 = arith.constant 24 : index
    %c0_51 = arith.constant 0 : index
    %88 = vector.load %arg6[%c24, %c0_51] : memref<32x32xf32, #tpu.memory_space<vmem>>, vector<8x32xf32>
    %cst_52 = arith.constant dense<0.000000e+00> : vector<16x32xf32>
    %89 = tpu.matmul %86, %88, %cst_52 {dimension_numbers = #tpu.dot_dimension_numbers<[1], [0], [0], [1], [0, 0, 1, 1], [], []>} : vector<16x8xf32>, vector<8x32xf32>, vector<16x32xf32> -> vector<16x32xf32>
    %90 = arith.addf %87, %89 : vector<16x32xf32>
    %c0_53 = arith.constant 0 : index
    %c0_54 = arith.constant 0 : index
    %91 = vector.load %arg9[%c0_53, %c0_54] : memref<16x32xf32, #tpu.memory_space<vmem>>, vector<16x32xf32>
    tpu.vector_store %arg9[%c0_53, %c0_54], %90 {strides = array<i32>} : memref<16x32xf32, #tpu.memory_space<vmem>>, vector<16x32xf32>,
    %c0_55 = arith.constant 0 : index
    %c0_56 = arith.constant 0 : index
    %92 = vector.load %arg9[%c0_55, %c0_56] : memref<16x32xf32, #tpu.memory_space<vmem>>, vector<16x32xf32>
    %c0_57 = arith.constant 0 : index
    %c0_58 = arith.constant 0 : index
    %c0_59 = arith.constant 0 : index
    %93 = vector.load %arg8[%c0_57, %c0_58, %c0_59] : memref<1x16x32xf32, #tpu.memory_space<vmem>>, vector<1x16x32xf32>
    %94 = vector.shape_cast %93 : vector<1x16x32xf32> to vector<16x32xf32>
    %95 = vector.shape_cast %92 : vector<16x32xf32> to vector<1x16x32xf32>
    tpu.vector_store %arg8[%c0_57, %c0_58, %c0_59], %95 {strides = array<i32>} : memref<1x16x32xf32, #tpu.memory_space<vmem>>, vector<1x16x32xf32>,
    return
  }
  func.func @transform_0(%arg0: i32, %arg1: i32) -> (i32, i32, i32) {
    %c0_i32 = arith.constant 0 : i32
    %c0_i32_0 = arith.constant 0 : i32
    return %arg0, %arg1, %c0_i32 : i32, i32, i32
  }
  func.func @transform_1(%arg0: i32, %arg1: i32) -> (i32, i32, i32) {
    %c0_i32 = arith.constant 0 : i32
    %c0_i32_0 = arith.constant 0 : i32
    %c0_i32_1 = arith.constant 0 : i32
    return %arg0, %c0_i32, %c0_i32_0 : i32, i32, i32
  }
  func.func @transform_2(%arg0: i32, %arg1: i32) -> (i32, i32, i32) {
    %c0_i32 = arith.constant 0 : i32
    %c0_i32_0 = arith.constant 0 : i32
    %c0_i32_1 = arith.constant 0 : i32
    return %arg0, %c0_i32, %c0_i32_0 : i32, i32, i32
  }
  func.func @transform_3(%arg0: i32, %arg1: i32) -> (i32, i32) {
    %c0_i32 = arith.constant 0 : i32
    %c0_i32_0 = arith.constant 0 : i32
    %c0_i32_1 = arith.constant 0 : i32
    return %c0_i32, %c0_i32_0 : i32, i32
  }
  func.func @transform_4(%arg0: i32, %arg1: i32) -> (i32, i32) {
    %c0_i32 = arith.constant 0 : i32
    %c0_i32_0 = arith.constant 0 : i32
    %c0_i32_1 = arith.constant 0 : i32
    return %c0_i32, %c0_i32_0 : i32, i32
  }
  func.func @transform_5(%arg0: i32, %arg1: i32) -> (i32, i32) {
    %c0_i32 = arith.constant 0 : i32
    %c0_i32_0 = arith.constant 0 : i32
    %c0_i32_1 = arith.constant 0 : i32
    return %c0_i32, %c0_i32_0 : i32, i32
  }
  func.func @transform_6(%arg0: i32, %arg1: i32) -> (i32, i32, i32) {
    %c0_i32 = arith.constant 0 : i32
    %c0_i32_0 = arith.constant 0 : i32
    return %arg0, %arg1, %c0_i32 : i32, i32, i32
  }
}

</mosaic_0001>

<llo_original>
// kernel: tpu_custom_call.1
$region0: #{tpu_custom_call.1}
  #allocation0 [shape = 'u32[]', space=smem, size = 0x4, offset = 0x4, fixed_abs, tag = 'smem constant byte address 0x4 - core index']
  #allocation1 [shape = 'u32[144,128]{1,0:T(1,128)}', space=vmem, size = 0x12000, scoped, tag = 'internal scratch']
  #allocation2 [shape = 'f32[16,32]{1,0:T(8,128)}', space=vmem, size = 0x2000, scoped, tag = 'scratch operand']
  %s0 = inlined_call_operand.hbm [shape: f32[2,16,32], index: 0, kind: input, shape index: {}]
  %s1 = inlined_call_operand.hbm [shape: f32[2,8,32], index: 1, kind: input, shape index: {}]
  %s2 = inlined_call_operand.hbm [shape: f32[2,8,32], index: 2, kind: input, shape index: {}]
  %s3 = inlined_call_operand.hbm [shape: f32[32,32], index: 3, kind: input, shape index: {}]
  %s4 = inlined_call_operand.hbm [shape: f32[32,32], index: 4, kind: input, shape index: {}]
  %s5 = inlined_call_operand.vmem [shape: f32[1,32], index: 5, kind: input, shape index: {}]
  %s6 = inlined_call_operand.hbm [shape: f32[2,16,32], index: 6, kind: output, shape index: {}]
  %s7 = sld [smem:[#allocation0]]
  $region77: #{tpu_custom_call.1} parent=0
    _
  %s9 = ssub.s32 1, %s7
  %s10 = scalar_select 0, %s9, %s7
  $region1: #{tpu_custom_call.1} parent=0
    #allocation3 [shape = 'u8[16384]{0}', space=vmem, size = 0x4000, scoped, tag = 'input window, operand 0']
    #allocation4 [shape = 's32[2]{0}', space=sflag, size = 0x8, scoped, tag = 'scoped memory for tpu_custom_call.1']
    #allocation5 [shape = 's32[2]{0}', space=sflag, size = 0x8, scoped, tag = 'scoped memory for tpu_custom_call.1']
    #allocation6 [shape = 'u8[8192]{0}', space=vmem, size = 0x2000, scoped, tag = 'input window, operand 1']
    #allocation7 [shape = 's32[2]{0}', space=sflag, size = 0x8, scoped, tag = 'scoped memory for tpu_custom_call.1']
    #allocation8 [shape = 'u8[8192]{0}', space=vmem, size = 0x2000, scoped, tag = 'input window, operand 2']
    #allocation9 [shape = 'u8[16384]{0}', space=vmem, size = 0x4000, scoped, tag = 'input window, operand 3, single buffered']
    #allocation10 [shape = 's32[1]{0}', space=sflag, size = 0x4, scoped, tag = 'scoped memory for tpu_custom_call.1']
    #allocation11 [shape = 'u8[16384]{0}', space=vmem, size = 0x4000, scoped, tag = 'input window, operand 4, single buffered']
    #allocation12 [shape = 'u8[16384]{0}', space=vmem, size = 0x4000, scoped, tag = 'output window, operand 0']
    %11 = vsyncpa [#allocation4], 0
    %s12 = scalar_lea.sflag [#allocation4], 1
    %13 = vsyncpa %s12, 0
    %14 = vsyncpa [#allocation7], 0
    %s15 = scalar_lea.sflag [#allocation7], 1
    %16 = vsyncpa %s15, 0
    %17 = vsyncpa [#allocation10], 0
    %18 = vsyncpa [#allocation5], 0
    %s19 = scalar_lea.sflag [#allocation5], 1
    %20 = vsyncpa %s19, 0
    loop: start=0, step=1, limit=4
    $region2: #{tpu_custom_call.1} parent=1 // loop_pre_header
      _
    $region3: #{tpu_custom_call.1} parent=1 // loop_header
      %s22 = sphi 0, %s26
      %p23 = scmp.ge.s32.totalorder %s22, 4
      %s29 = sphi 0, %s41
      %s30 = sphi 0, %s37
      %s31 = sphi 0, %s29
      %s32 = sphi 0, %s30
      %s33 = sphi 0, %s31
      %s34 = sphi 0, %s32
      %s46 = sphi 0, %s48
      %s49 = sphi 0, %s46
      %s50 = sphi 0, %s49
      %s66 = sphi 0, %s50
      %s72 = sphi 0, %s74
      %s75 = sphi 0, %s72
      %s76 = sphi 0, %s75
      %s92 = sphi 0, %s76
      %s98 = sphi 0, %s100
      %s101 = sphi 0, %s98
      %s102 = sphi 0, %s101
      %s118 = sphi 0, %s102
      %s122 = sphi 0, %s122
      %s124 = sphi 0, %s122
      %s125 = sphi 0, %s124
      %s139 = sphi 0, %s125
      %s143 = sphi 0, %s143
      %s145 = sphi 0, %s143
      %s146 = sphi 0, %s145
      %s160 = sphi 0, %s146
      %s164 = sphi 0, %s164
      %s166 = sphi 0, %s164
      %s167 = sphi 0, %s166
      %s181 = sphi 0, %s167
      %s189 = sphi 0, %s191
      %s192 = sphi 0, %s189
      %s193 = sphi 0, %s192
      %s209 = sphi 0, %s193
    $region4: #{tpu_custom_call.1} parent=1 // loop_header_branch
      %25 = sbr.rel (%p23) target = $region8
    $region5: #{tpu_custom_call.1} parent=1 // loop_body
      %s27 = ssub.s32 %s22, 1
      %s28 = ssub.s32 %s22, 2
      %s35 = sadd.s32 1, %s30
      %p36 = scmp.ge.s32.totalorder %s35, 1
      %s37 = scalar_select %p36, 0, %s35
      %s38 = sadd.s32 1, %s29
      %s39 = scalar_select %p36, %s38, %s29
      %p40 = scmp.ge.s32.totalorder %s39, 2
      %s41 = scalar_select %p40, 0, %s39
      %s42 = ssub.s32 %s29, %s41
      %s43 = ssub.s32 %s30, %s37
      %s44 = sor.u32 %s42, %s43
      %p45 = scmp.eq.s32.totalorder %s44, 0
      %s47 = sadd.s32 %s46, 1
      %s48 = scalar_select %p45, %s46, %s47
      %p51 = pneg %p45
      %p52 = scmp.eq.s32.totalorder %s22, 1
      %p53 = por %p51, %p52
      %p54 = scmp.ne.s32.totalorder %s46, %s49
      %p55 = scmp.eq.s32.totalorder %s22, 0
      %p56 = por %p54, %p55
      %p57 = scmp.ne.s32.totalorder %s46, %s49
      %p58 = scmp.eq.s32.totalorder %s27, 1
      %p59 = por %p57, %p58
      %p60 = scmp.ne.s32.totalorder %s49, %s50
      %p61 = scmp.eq.s32.totalorder %s27, 0
      %p62 = por %p60, %p61
      %p63 = scmp.ne.s32.totalorder %s49, %s50
      %p64 = scmp.eq.s32.totalorder %s28, 1
      %p65 = por %p63, %p64
      %p67 = scmp.ne.s32.totalorder %s50, %s66
      %p68 = scmp.eq.s32.totalorder %s28, 0
      %p69 = por %p67, %p68
      %s70 = ssub.s32 %s29, %s41
      %p71 = scmp.eq.s32.totalorder %s70, 0
      %s73 = sadd.s32 %s72, 1
      %s74 = scalar_select %p71, %s72, %s73
      %p77 = pneg %p71
      %p78 = scmp.eq.s32.totalorder %s22, 1
      %p79 = por %p77, %p78
      %p80 = scmp.ne.s32.totalorder %s72, %s75
      %p81 = scmp.eq.s32.totalorder %s22, 0
      %p82 = por %p80, %p81
      %p83 = scmp.ne.s32.totalorder %s72, %s75
      %p84 = scmp.eq.s32.totalorder %s27, 1
      %p85 = por %p83, %p84
      %p86 = scmp.ne.s32.totalorder %s75, %s76
      %p87 = scmp.eq.s32.totalorder %s27, 0
      %p88 = por %p86, %p87
      %p89 = scmp.ne.s32.totalorder %s75, %s76
      %p90 = scmp.eq.s32.totalorder %s28, 1
      %p91 = por %p89, %p90
      %p93 = scmp.ne.s32.totalorder %s76, %s92
      %p94 = scmp.eq.s32.totalorder %s28, 0
      %p95 = por %p93, %p94
      %s96 = ssub.s32 %s29, %s41
      %p97 = scmp.eq.s32.totalorder %s96, 0
      %s99 = sadd.s32 %s98, 1
      %s100 = scalar_select %p97, %s98, %s99
      %p103 = pneg %p97
      %p104 = scmp.eq.s32.totalorder %s22, 1
      %p105 = por %p103, %p104
      %p106 = scmp.ne.s32.totalorder %s98, %s101
      %p107 = scmp.eq.s32.totalorder %s22, 0
      %p108 = por %p106, %p107
      %p109 = scmp.ne.s32.totalorder %s98, %s101
      %p110 = scmp.eq.s32.totalorder %s27, 1
      %p111 = por %p109, %p110
      %p112 = scmp.ne.s32.totalorder %s101, %s102
      %p113 = scmp.eq.s32.totalorder %s27, 0
      %p114 = por %p112, %p113
      %p115 = scmp.ne.s32.totalorder %s101, %s102
      %p116 = scmp.eq.s32.totalorder %s28, 1
      %p117 = por %p115, %p116
      %p119 = scmp.ne.s32.totalorder %s102, %s118
      %p120 = scmp.eq.s32.totalorder %s28, 0
      %p121 = por %p119, %p120
      %s123 = sadd.s32 %s122, 1
      %p126 = scmp.eq.s32.totalorder %s22, 1
      %p127 = scmp.ne.s32.totalorder %s122, %s124
      %p128 = scmp.eq.s32.totalorder %s22, 0
      %p129 = por %p127, %p128
      %p130 = scmp.ne.s32.totalorder %s122, %s124
      %p131 = scmp.eq.s32.totalorder %s27, 1
      %p132 = por %p130, %p131
      %p133 = scmp.ne.s32.totalorder %s124, %s125
      %p134 = scmp.eq.s32.totalorder %s27, 0
      %p135 = por %p133, %p134
      %p136 = scmp.ne.s32.totalorder %s124, %s125
      %p137 = scmp.eq.s32.totalorder %s28, 1
      %p138 = por %p136, %p137
      %p140 = scmp.ne.s32.totalorder %s125, %s139
      %p141 = scmp.eq.s32.totalorder %s28, 0
      %p142 = por %p140, %p141
      %s144 = sadd.s32 %s143, 1
      %p147 = scmp.eq.s32.totalorder %s22, 1
      %p148 = scmp.ne.s32.totalorder %s143, %s145
      %p149 = scmp.eq.s32.totalorder %s22, 0
      %p150 = por %p148, %p149
      %p151 = scmp.ne.s32.totalorder %s143, %s145
      %p152 = scmp.eq.s32.totalorder %s27, 1
      %p153 = por %p151, %p152
      %p154 = scmp.ne.s32.totalorder %s145, %s146
      %p155 = scmp.eq.s32.totalorder %s27, 0
      %p156 = por %p154, %p155
      %p157 = scmp.ne.s32.totalorder %s145, %s146
      %p158 = scmp.eq.s32.totalorder %s28, 1
      %p159 = por %p157, %p158
      %p161 = scmp.ne.s32.totalorder %s146, %s160
      %p162 = scmp.eq.s32.totalorder %s28, 0
      %p163 = por %p161, %p162
      %s165 = sadd.s32 %s164, 1
      %p168 = scmp.eq.s32.totalorder %s22, 1
      %p169 = scmp.ne.s32.totalorder %s164, %s166
      %p170 = scmp.eq.s32.totalorder %s22, 0
      %p171 = por %p169, %p170
      %p172 = scmp.ne.s32.totalorder %s164, %s166
      %p173 = scmp.eq.s32.totalorder %s27, 1
      %p174 = por %p172, %p173
      %p175 = scmp.ne.s32.totalorder %s166, %s167
      %p176 = scmp.eq.s32.totalorder %s27, 0
      %p177 = por %p175, %p176
      %p178 = scmp.ne.s32.totalorder %s166, %s167
      %p179 = scmp.eq.s32.totalorder %s28, 1
      %p180 = por %p178, %p179
      %p182 = scmp.ne.s32.totalorder %s167, %s181
      %p183 = scmp.eq.s32.totalorder %s28, 0
      %p184 = por %p182, %p183
      %s185 = ssub.s32 %s29, %s41
      %s186 = ssub.s32 %s30, %s37
      %s187 = sor.u32 %s185, %s186
      %p188 = scmp.eq.s32.totalorder %s187, 0
      %s190 = sadd.s32 %s189, 1
      %s191 = scalar_select %p188, %s189, %s190
      %p194 = pneg %p188
      %p195 = scmp.eq.s32.totalorder %s22, 1
      %p196 = por %p194, %p195
      %p197 = scmp.ne.s32.totalorder %s189, %s192
      %p198 = scmp.eq.s32.totalorder %s22, 0
      %p199 = por %p197, %p198
      %p200 = scmp.ne.s32.totalorder %s189, %s192
      %p201 = scmp.eq.s32.totalorder %s27, 1
      %p202 = por %p200, %p201
      %p203 = scmp.ne.s32.totalorder %s192, %s193
      %p204 = scmp.eq.s32.totalorder %s27, 0
      %p205 = por %p203, %p204
      %p206 = scmp.ne.s32.totalorder %s192, %s193
      %p207 = scmp.eq.s32.totalorder %s28, 1
      %p208 = por %p206, %p207
      %p210 = scmp.ne.s32.totalorder %s193, %s209
      %p211 = scmp.eq.s32.totalorder %s28, 0
      %p212 = por %p210, %p211
      %p213 = scmp.le.s32.totalorder 1, %s22
      %p214 = scmp.lt.s32.totalorder %s22, 3
      %p215 = pnand %p213, %p214
      %p216 = pneg %p215
      // Predicated region
      $region9: #{tpu_custom_call.1} parent=5 // pred_check
        _
      $region10: #{tpu_custom_call.1} parent=5 // pred_check_branch
        %218 = sbr.rel (%p215) target = $region12
      $region11: #{tpu_custom_call.1} parent=5 // pred_region
        %s219 = ssub.s32 %s22, 1
        // Predicated region
        $region13: #{tpu_custom_call.1} parent=11 // pred_check
          %p220 = pneg %p135
        $region14: #{tpu_custom_call.1} parent=11 // pred_check_branch
          %222 = sbr.rel (%p220) target = $region16
        $region15: #{tpu_custom_call.1} parent=11 // pred_region
          %s224 = ssub.s32 512, 512
          %225 = vsyncadd [#allocation10], %s224
          %s226 = sshll.u32 [#allocation9], 4
          %s227 = int_to_ptr.vmem [resolvable:$true] %s226
          %232 = dma.hbm_to_vmem [thread:$0]  %s3, 512, %s227, [#allocation10], 128, 128, 8
        $region16: #{tpu_custom_call.1} parent=11 // pred_fallthru
          _
        // Predicated region
        $region17: #{tpu_custom_call.1} parent=11 // pred_check
          %p233 = pneg %p156
        $region18: #{tpu_custom_call.1} parent=11 // pred_check_branch
          %235 = sbr.rel (%p233) target = $region20
        $region19: #{tpu_custom_call.1} parent=11 // pred_region
          %s237 = ssub.s32 512, 512
          %238 = vsyncadd [#allocation10], %s237
          %s239 = sshll.u32 [#allocation11], 4
          %s240 = int_to_ptr.vmem [resolvable:$true] %s239
          %245 = dma.hbm_to_vmem [thread:$0]  %s4, 512, %s240, [#allocation10], 128, 128, 8
        $region20: #{tpu_custom_call.1} parent=11 // pred_fallthru
          _
        // Predicated region
        $region21: #{tpu_custom_call.1} parent=11 // pred_check
          %p246 = pneg %p177
        $region22: #{tpu_custom_call.1} parent=11 // pred_check_branch
          %248 = sbr.rel (%p246) target = $region24
        $region23: #{tpu_custom_call.1} parent=11 // pred_region
          _
        $region24: #{tpu_custom_call.1} parent=11 // pred_fallthru
          _
      $region12: #{tpu_custom_call.1} parent=5 // pred_fallthru
        _
      %p249 = scmp.lt.s32.totalorder %s22, 2
      // Predicated region
      $region25: #{tpu_custom_call.1} parent=5 // pred_check
        %p250 = pneg %p249
      $region26: #{tpu_custom_call.1} parent=5 // pred_check_branch
        %252 = sbr.rel (%p250) target = $region28
      $region27: #{tpu_custom_call.1} parent=5 // pred_region
        // Predicated region
        $region29: #{tpu_custom_call.1} parent=27 // pred_check
          %p253 = pneg %p56
        $region30: #{tpu_custom_call.1} parent=27 // pred_check_branch
          %255 = sbr.rel (%p253) target = $region32
        $region31: #{tpu_custom_call.1} parent=27 // pred_region
          %s256 = sand.u32 %s46, 1
          %s257 = scalar_lea.sflag [#allocation4], %s256
          %s258 = sand.u32 %s46, 1
          %s259 = smul.addr %s258, 16
          %s260 = scalar_lea.vmem [#allocation3], %s259
          %s261 = smul.u32 2, %s30
          %s263 = ssub.s32 256, 256
          %264 = vsyncadd %s257, %s263
          %s265 = smul.addr %s29, 2
          %s266 = sadd.s32 %s261, %s265
          %s267 = smul.addr %s266, 128
          %s268 = scalar_lea.hbm %s0, %s267
          %s269 = sshll.u32 %s260, 4
          %s270 = int_to_ptr.vmem [resolvable:$true] %s269
          %275 = dma.hbm_to_vmem [thread:$0]  %s268, 256, %s270, %s257, 128, 128, 8
        $region32: #{tpu_custom_call.1} parent=27 // pred_fallthru
          _
        // Predicated region
        $region33: #{tpu_custom_call.1} parent=27 // pred_check
          %p276 = pneg %p82
        $region34: #{tpu_custom_call.1} parent=27 // pred_check_branch
          %278 = sbr.rel (%p276) target = $region36
        $region35: #{tpu_custom_call.1} parent=27 // pred_region
          %s279 = sand.u32 %s22, 1
          %s280 = scalar_lea.sflag [#allocation7], %s279
          %s281 = sand.u32 %s72, 1
          %s282 = smul.addr %s281, 8
          %s283 = scalar_lea.vmem [#allocation6], %s282
          %s285 = ssub.s32 128, 128
          %286 = vsyncadd %s280, %s285
          %s287 = smul.addr %s29, 128
          %s288 = scalar_lea.hbm %s1, %s287
          %s290 = sshll.u32 %s283, 4
          %s291 = int_to_ptr.vmem [resolvable:$true] %s290
          %293 = dma.hbm_to_vmem [thread:$0]  %s288, 128, %s291, %s280
        $region36: #{tpu_custom_call.1} parent=27 // pred_fallthru
          _
        // Predicated region
        $region37: #{tpu_custom_call.1} parent=27 // pred_check
          %p294 = pneg %p108
        $region38: #{tpu_custom_call.1} parent=27 // pred_check_branch
          %296 = sbr.rel (%p294) target = $region40
        $region39: #{tpu_custom_call.1} parent=27 // pred_region
          %s297 = sand.u32 %s22, 1
          %s298 = scalar_lea.sflag [#allocation7], %s297
          %s299 = sand.u32 %s98, 1
          %s300 = smul.addr %s299, 8
          %s301 = scalar_lea.vmem [#allocation8], %s300
          %s303 = ssub.s32 128, 128
          %304 = vsyncadd %s298, %s303
          %s305 = smul.addr %s29, 128
          %s306 = scalar_lea.hbm %s2, %s305
          %s308 = sshll.u32 %s301, 4
          %s309 = int_to_ptr.vmem [resolvable:$true] %s308
          %311 = dma.hbm_to_vmem [thread:$0]  %s306, 128, %s309, %s298
        $region40: #{tpu_custom_call.1} parent=27 // pred_fallthru
          _
      $region28: #{tpu_custom_call.1} parent=5 // pred_fallthru
        _
      %p312 = scmp.le.s32.totalorder 1, %s22
      %p313 = scmp.lt.s32.totalorder %s22, 3
      %p314 = pnand %p312, %p313
      %p315 = pneg %p314
      // Predicated region
      $region41: #{tpu_custom_call.1} parent=5 // pred_check
        _
      $region42: #{tpu_custom_call.1} parent=5 // pred_check_branch
        %317 = sbr.rel (%p314) target = $region44
      $region43: #{tpu_custom_call.1} parent=5 // pred_region
        %s318 = ssub.s32 %s22, 1
        %s319 = sand.u32 %s49, 1
        %s320 = scalar_lea.sflag [#allocation4], %s319
        %s321 = sand.u32 %s49, 1
        %s322 = smul.addr %s321, 16
        %s323 = scalar_lea.vmem [#allocation3], %s322
        // Predicated region
        $region45: #{tpu_custom_call.1} parent=43 // pred_check
          %p324 = pneg %p62
        $region46: #{tpu_custom_call.1} parent=43 // pred_check_branch
          %326 = sbr.rel (%p324) target = $region48
        $region47: #{tpu_custom_call.1} parent=43 // pred_region
          %327 = dma.done %s320, 256
        $region48: #{tpu_custom_call.1} parent=43 // pred_fallthru
          _
        %s328 = sand.u32 %s27, 1
        %s329 = scalar_lea.sflag [#allocation7], %s328
        %s330 = sand.u32 %s75, 1
        %s331 = smul.addr %s330, 8
        %s332 = scalar_lea.vmem [#allocation6], %s331
        // Predicated region
        $region49: #{tpu_custom_call.1} parent=43 // pred_check
          %p333 = pneg %p88
        $region50: #{tpu_custom_call.1} parent=43 // pred_check_branch
          %335 = sbr.rel (%p333) target = $region52
        $region51: #{tpu_custom_call.1} parent=43 // pred_region
          %336 = dma.done %s329, 128
        $region52: #{tpu_custom_call.1} parent=43 // pred_fallthru
          _
        %s337 = sand.u32 %s27, 1
        %s338 = scalar_lea.sflag [#allocation7], %s337
        %s339 = sand.u32 %s101, 1
        %s340 = smul.addr %s339, 8
        %s341 = scalar_lea.vmem [#allocation8], %s340
        // Predicated region
        $region53: #{tpu_custom_call.1} parent=43 // pred_check
          %p342 = pneg %p114
        $region54: #{tpu_custom_call.1} parent=43 // pred_check_branch
          %344 = sbr.rel (%p342) target = $region56
        $region55: #{tpu_custom_call.1} parent=43 // pred_region
          %345 = dma.done %s338, 128
        $region56: #{tpu_custom_call.1} parent=43 // pred_fallthru
          _
        // Predicated region
        $region57: #{tpu_custom_call.1} parent=43 // pred_check
          %p346 = pneg %p135
        $region58: #{tpu_custom_call.1} parent=43 // pred_check_branch
          %348 = sbr.rel (%p346) target = $region60
        $region59: #{tpu_custom_call.1} parent=43 // pred_region
          %349 = dma.done [#allocation10], 512
        $region60: #{tpu_custom_call.1} parent=43 // pred_fallthru
          _
        // Predicated region
        $region61: #{tpu_custom_call.1} parent=43 // pred_check
          %p350 = pneg %p156
        $region62: #{tpu_custom_call.1} parent=43 // pred_check_branch
          %352 = sbr.rel (%p350) target = $region64
        $region63: #{tpu_custom_call.1} parent=43 // pred_region
          %353 = dma.done [#allocation10], 512
        $region64: #{tpu_custom_call.1} parent=43 // pred_fallthru
          _
        %s354 = sand.u32 %s49, 1
        %s355 = scalar_lea.sflag [#allocation4], %s354
        %s356 = sand.u32 %s49, 1
        %s357 = smul.addr %s356, 16
        %s358 = scalar_lea.vmem [#allocation3], %s357
        %p359 = pneg %p62
        %p360 = pneg %p59
        %s361 = sand.u32 %s27, 1
        %s362 = scalar_lea.sflag [#allocation7], %s361
        %s363 = sand.u32 %s75, 1
        %s364 = smul.addr %s363, 8
        %s365 = scalar_lea.vmem [#allocation6], %s364
        %p366 = pneg %p88
        %p367 = pneg %p85
        %s368 = sand.u32 %s27, 1
        %s369 = scalar_lea.sflag [#allocation7], %s368
        %s370 = sand.u32 %s101, 1
        %s371 = smul.addr %s370, 8
        %s372 = scalar_lea.vmem [#allocation8], %s371
        %p373 = pneg %p114
        %p374 = pneg %p111
        %p375 = pneg %p135
        %p376 = pneg %p132
        %p377 = pneg %p156
        %p378 = pneg %p153
        %p379 = pneg %p177
        %p380 = pneg %p174
        %p381 = pneg %p205
        %p382 = pneg %p202
        %s383 = sand.u32 %s192, 1
        %s384 = scalar_lea.sflag [#allocation5], %s383
        %s385 = sand.u32 %s192, 1
        %s386 = smul.addr %s385, 16
        %s387 = scalar_lea.vmem [#allocation12], %s386
        %s388 = smul.u32 2, %s32
        %s389 = smul.u32 2, %s32
        %v390 = vld [vmem:[%s323] sm:$0xff]
        %v391 = vld [vmem:[%s323 + $0x8] sm:$0xff]
        %v392 = vld [vmem:[%s332] sm:$0xff]
        %v393 = vld [vmem:[%s341] sm:$0xff]
        %v394 = vld [vmem:[#allocation9] sm:$0xff]
        %v395 = vld [vmem:[#allocation9 + $0x8] sm:$0xff]
        %v396 = vld [vmem:[#allocation9 + $0x10] sm:$0xff]
        %v397 = vld [vmem:[#allocation9 + $0x18] sm:$0xff]
        %vm398 = vcmask 261120
        %v400 = vsel %vm398, %v390, 0
        %v403 = vsel %vm398, %v391, 0
        %405 = vmatprep.subr.mxu0 0.0
        %406 = vmatpush1.msra.mxu0 0.0
        %407 = vmatprep.subr.mxu0 0.0
        %408 = vmatpush1.msra.mxu0 0.0
        %409 = vmatprep.subr.mxu0 0.0
        %410 = vmatpush1.msra.mxu0 0.0
        %411 = vmatprep.subr.mxu0 0.0
        %412 = vmatpush1.msra.mxu0 0.0
        %413 = vmatprep.subr.mxu0 0.0
        %414 = vmatpush1.msra.mxu0 0.0
        %415 = vmatprep.subr.mxu0 0.0
        %416 = vmatpush1.msra.mxu0 0.0
        %417 = vmatprep.subr.mxu0 0.0
        %418 = vmatpush1.msra.mxu0 0.0
        %419 = vmatprep.subr.mxu0 0.0
        %420 = vmatpush1.msra.mxu0 0.0
        %421 = vmatprep.subr.mxu0 0.0
        %422 = vmatpush1.msra.mxu0 0.0
        %423 = vmatprep.subr.mxu0 0.0
        %424 = vmatpush1.msra.mxu0 0.0
        %425 = vmatprep.subr.mxu0 0.0
        %426 = vmatpush1.msra.mxu0 0.0
        %427 = vmatprep.subr.mxu0 0.0
        %428 = vmatpush1.msra.mxu0 0.0
        %429 = vmatprep.subr.mxu0 0.0
        %430 = vmatpush1.msra.mxu0 %v397
        %431 = vmatprep.subr.mxu0 0.0
        %432 = vmatpush1.msra.mxu0 %v396
        %433 = vmatprep.subr.mxu0 0.0
        %434 = vmatpush1.msra.mxu0 %v395
        %435 = vmatprep.subr.mxu0 0.0
        %436 = vmatpush1.msra.mxu0 %v394
        %437 = vmatprep.subr.mxu0 0.0
        %438 = vmatpush2.msra.mxu0 0.0
        %439 = vmatprep.subr.mxu0 0.0
        %440 = vmatpush2.msra.mxu0 0.0
        %441 = vmatprep.subr.mxu0 0.0
        %442 = vmatpush2.msra.mxu0 0.0
        %443 = vmatprep.subr.mxu0 0.0
        %444 = vmatpush2.msra.mxu0 0.0
        %445 = vmatprep.subr.mxu0 0.0
        %446 = vmatpush2.msra.mxu0 0.0
        %447 = vmatprep.subr.mxu0 0.0
        %448 = vmatpush2.msra.mxu0 0.0
        %449 = vmatprep.subr.mxu0 0.0
        %450 = vmatpush2.msra.mxu0 0.0
        %451 = vmatprep.subr.mxu0 0.0
        %452 = vmatpush2.msra.mxu0 0.0
        %453 = vmatprep.subr.mxu0 0.0
        %454 = vmatpush2.msra.mxu0 0.0
        %455 = vmatprep.subr.mxu0 0.0
        %456 = vmatpush2.msra.mxu0 0.0
        %457 = vmatprep.subr.mxu0 0.0
        %458 = vmatpush2.msra.mxu0 0.0
        %459 = vmatprep.subr.mxu0 0.0
        %460 = vmatpush2.msra.mxu0 0.0
        %461 = vmatprep.subr.mxu0 0.0
        %462 = vmatpush2.msra.mxu0 0.0
        %463 = vmatprep.subr.mxu0 0.0
        %464 = vmatpush2.msra.mxu0 0.0
        %465 = vmatprep.subr.mxu0 0.0
        %466 = vmatpush2.msra.mxu0 0.0
        %467 = vmatprep.subr.mxu0 0.0
        %468 = vmatpush2.msra.mxu0 0.0
        %469 = vmatprep.mubr.f32.mxu0 0.0
        %470 = vmatmul.mubr.f32.gmra.mxu0 %v400
        %v471 = vpop.f32.mrf.mxu0
        %v472 = vadd.f32 0.0, %v471
        %v473 = vpop.f32.mrf.mxu0
        %474 = vmatprep.mubr.f32.mxu0 0.0
        %475 = vmatmul.mubr.f32.gmra.mxu0 %v403
        %v476 = vpop.f32.mrf.mxu0
        %v477 = vadd.f32 0.0, %v476
        %v478 = vpop.f32.mrf.mxu0
        %479 = vdwg.mxu0
        %v480 = vld [vmem:[%s5] sm:$0x1]
        %v482 = vlaneseq
        %v483 = vshrl.u32 %v482, 7
        %v484 = vsub.s32 0, %v483
        %v485 = vrot.slane %v480, %v484
        %487 = vst.msk [vmem:[#allocation2] sm:$0xff] %vm398, %v485
        %488 = vst.msk [vmem:[#allocation2 + $0x8] sm:$0xff] %vm398, %v485
        %vm489 = vcmask 64512
        %v491 = vsel %vm489, %v472, 0
        %v494 = vsel %vm489, %v477, 0
        %v497 = vsel %vm489, %v392, 0
        %499 = vmatprep.subr.mxu0 0.0
        %500 = vmatpush1.xpose.msra.mxu0 0.0
        %501 = vmatprep.subr.mxu0 0.0
        %502 = vmatpush1.xpose.msra.mxu0 0.0
        %503 = vmatprep.subr.mxu0 0.0
        %504 = vmatpush1.xpose.msra.mxu0 0.0
        %505 = vmatprep.subr.mxu0 0.0
        %506 = vmatpush1.xpose.msra.mxu0 0.0
        %507 = vmatprep.subr.mxu0 0.0
        %508 = vmatpush1.xpose.msra.mxu0 0.0
        %509 = vmatprep.subr.mxu0 0.0
        %510 = vmatpush1.xpose.msra.mxu0 0.0
        %511 = vmatprep.subr.mxu0 0.0
        %512 = vmatpush1.xpose.msra.mxu0 0.0
        %513 = vmatprep.subr.mxu0 0.0
        %514 = vmatpush1.xpose.msra.mxu0 0.0
        %515 = vmatprep.subr.mxu0 0.0
        %516 = vmatpush1.xpose.msra.mxu0 0.0
        %517 = vmatprep.subr.mxu0 0.0
        %518 = vmatpush1.xpose.msra.mxu0 0.0
        %519 = vmatprep.subr.mxu0 0.0
        %520 = vmatpush1.xpose.msra.mxu0 0.0
        %521 = vmatprep.subr.mxu0 0.0
        %522 = vmatpush1.xpose.msra.mxu0 0.0
        %523 = vmatprep.subr.mxu0 0.0
        %524 = vmatpush1.xpose.msra.mxu0 0.0
        %525 = vmatprep.subr.mxu0 0.0
        %526 = vmatpush1.xpose.msra.mxu0 0.0
        %527 = vmatprep.subr.mxu0 0.0
        %528 = vmatpush1.xpose.msra.mxu0 0.0
        %529 = vmatprep.subr.mxu0 0.0
        %530 = vmatpush1.xpose.msra.mxu0 %v497
        %531 = vmatprep.subr.mxu0 0.0
        %532 = vmatpush2.xpose.msra.mxu0 0.0
        %533 = vmatprep.subr.mxu0 0.0
        %534 = vmatpush2.xpose.msra.mxu0 0.0
        %535 = vmatprep.subr.mxu0 0.0
        %536 = vmatpush2.xpose.msra.mxu0 0.0
        %537 = vmatprep.subr.mxu0 0.0
        %538 = vmatpush2.xpose.msra.mxu0 0.0
        %539 = vmatprep.subr.mxu0 0.0
        %540 = vmatpush2.xpose.msra.mxu0 0.0
        %541 = vmatprep.subr.mxu0 0.0
        %542 = vmatpush2.xpose.msra.mxu0 0.0
        %543 = vmatprep.subr.mxu0 0.0
        %544 = vmatpush2.xpose.msra.mxu0 0.0
        %545 = vmatprep.subr.mxu0 0.0
        %546 = vmatpush2.xpose.msra.mxu0 0.0
        %547 = vmatprep.subr.mxu0 0.0
        %548 = vmatpush2.xpose.msra.mxu0 0.0
        %549 = vmatprep.subr.mxu0 0.0
        %550 = vmatpush2.xpose.msra.mxu0 0.0
        %551 = vmatprep.subr.mxu0 0.0
        %552 = vmatpush2.xpose.msra.mxu0 0.0
        %553 = vmatprep.subr.mxu0 0.0
        %554 = vmatpush2.xpose.msra.mxu0 0.0
        %555 = vmatprep.subr.mxu0 0.0
        %556 = vmatpush2.xpose.msra.mxu0 0.0
        %557 = vmatprep.subr.mxu0 0.0
        %558 = vmatpush2.xpose.msra.mxu0 0.0
        %559 = vmatprep.subr.mxu0 0.0
        %560 = vmatpush2.xpose.msra.mxu0 0.0
        %561 = vmatprep.subr.mxu0 0.0
        %562 = vmatpush2.xpose.msra.mxu0 0.0
        %563 = vmatprep.mubr.f32.mxu0 0.0
        %564 = vmatmul.mubr.f32.gmra.mxu0 %v491
        %v565 = vpop.f32.mrf.mxu0
        %v566 = vadd.f32 0.0, %v565
        %v567 = vpop.f32.mrf.mxu0
        %568 = vmatprep.mubr.f32.mxu0 0.0
        %569 = vmatmul.mubr.f32.gmra.mxu0 %v494
        %v570 = vpop.f32.mrf.mxu0
        %v571 = vadd.f32 0.0, %v570
        %v572 = vpop.f32.mrf.mxu0
        %573 = vdwg.mxu0
        %v574 = vsel %vm489, %v566, -inf
        %575 = vmax.xlane.f32.xlu0 %v574
        %v576 = vpop.xlane.xlu0 %575
        %v577 = vsel %vm489, %v571, -inf
        %578 = vmax.xlane.f32.xlu0 %v577
        %v579 = vpop.xlane.xlu0 %578
        %v580 = vsub.f32 %v566, %v576
        %v581 = vsub.f32 %v571, %v579
        %v582 = vmul.f32 %v580, 1.442695
        %v583 = vpow.pop %v582
        %v584 = vmul.f32 %v581, 1.442695
        %v585 = vpow.pop %v584
        %v586 = vsel %vm489, %v583, 0.0
        %587 = vadd.xlane.f32.xlu0 %v586
        %v588 = vpop.xlane.xlu0 %587
        %v589 = vsel %vm489, %v585, 0.0
        %590 = vadd.xlane.f32.xlu0 %v589
        %v591 = vpop.xlane.xlu0 %590
        %v593 = vsel %vm489, %v583, 0
        %v596 = vsel %vm489, %v585, 0
        %598 = vmatprep.subr.mxu0 0.0
        %599 = vmatpush1.msra.mxu0 0.0
        %600 = vmatprep.subr.mxu0 0.0
        %601 = vmatpush1.msra.mxu0 0.0
        %602 = vmatprep.subr.mxu0 0.0
        %603 = vmatpush1.msra.mxu0 0.0
        %604 = vmatprep.subr.mxu0 0.0
        %605 = vmatpush1.msra.mxu0 0.0
        %606 = vmatprep.subr.mxu0 0.0
        %607 = vmatpush1.msra.mxu0 0.0
        %608 = vmatprep.subr.mxu0 0.0
        %609 = vmatpush1.msra.mxu0 0.0
        %610 = vmatprep.subr.mxu0 0.0
        %611 = vmatpush1.msra.mxu0 0.0
        %612 = vmatprep.subr.mxu0 0.0
        %613 = vmatpush1.msra.mxu0 0.0
        %614 = vmatprep.subr.mxu0 0.0
        %615 = vmatpush1.msra.mxu0 0.0
        %616 = vmatprep.subr.mxu0 0.0
        %617 = vmatpush1.msra.mxu0 0.0
        %618 = vmatprep.subr.mxu0 0.0
        %619 = vmatpush1.msra.mxu0 0.0
        %620 = vmatprep.subr.mxu0 0.0
        %621 = vmatpush1.msra.mxu0 0.0
        %622 = vmatprep.subr.mxu0 0.0
        %623 = vmatpush1.msra.mxu0 0.0
        %624 = vmatprep.subr.mxu0 0.0
        %625 = vmatpush1.msra.mxu0 0.0
        %626 = vmatprep.subr.mxu0 0.0
        %627 = vmatpush1.msra.mxu0 0.0
        %628 = vmatprep.subr.mxu0 0.0
        %629 = vmatpush1.msra.mxu0 %v393
        %630 = vmatprep.subr.mxu0 0.0
        %631 = vmatpush2.msra.mxu0 0.0
        %632 = vmatprep.subr.mxu0 0.0
        %633 = vmatpush2.msra.mxu0 0.0
        %634 = vmatprep.subr.mxu0 0.0
        %635 = vmatpush2.msra.mxu0 0.0
        %636 = vmatprep.subr.mxu0 0.0
        %637 = vmatpush2.msra.mxu0 0.0
        %638 = vmatprep.subr.mxu0 0.0
        %639 = vmatpush2.msra.mxu0 0.0
        %640 = vmatprep.subr.mxu0 0.0
        %641 = vmatpush2.msra.mxu0 0.0
        %642 = vmatprep.subr.mxu0 0.0
        %643 = vmatpush2.msra.mxu0 0.0
        %644 = vmatprep.subr.mxu0 0.0
        %645 = vmatpush2.msra.mxu0 0.0
        %646 = vmatprep.subr.mxu0 0.0
        %647 = vmatpush2.msra.mxu0 0.0
        %648 = vmatprep.subr.mxu0 0.0
        %649 = vmatpush2.msra.mxu0 0.0
        %650 = vmatprep.subr.mxu0 0.0
        %651 = vmatpush2.msra.mxu0 0.0
        %652 = vmatprep.subr.mxu0 0.0
        %653 = vmatpush2.msra.mxu0 0.0
        %654 = vmatprep.subr.mxu0 0.0
        %655 = vmatpush2.msra.mxu0 0.0
        %656 = vmatprep.subr.mxu0 0.0
        %657 = vmatpush2.msra.mxu0 0.0
        %658 = vmatprep.subr.mxu0 0.0
        %659 = vmatpush2.msra.mxu0 0.0
        %660 = vmatprep.subr.mxu0 0.0
        %661 = vmatpush2.msra.mxu0 0.0
        %662 = vmatprep.mubr.f32.mxu0 0.0
        %663 = vmatmul.mubr.f32.gmra.mxu0 %v593
        %v664 = vpop.f32.mrf.mxu0
        %v665 = vadd.f32 0.0, %v664
        %v666 = vpop.f32.mrf.mxu0
        %667 = vmatprep.mubr.f32.mxu0 0.0
        %668 = vmatmul.mubr.f32.gmra.mxu0 %v596
        %v669 = vpop.f32.mrf.mxu0
        %v670 = vadd.f32 0.0, %v669
        %v671 = vpop.f32.mrf.mxu0
        %672 = vdwg.mxu0
        %v673 = vrcp.pop %v588
        %v674 = vrcp.pop %v591
        %v675 = vmul.f32 %v665, %v673
        %v676 = vmul.f32 %v670, %v674
        %v677 = vld [vmem:[#allocation2] sm:$0xff]
        %v678 = vld [vmem:[#allocation2 + $0x8] sm:$0xff]
        %v679 = vld [vmem:[#allocation11] sm:$0xff]
        %v681 = vsel %vm489, %v675, 0
        %v684 = vsel %vm489, %v676, 0
        %686 = vmatprep.subr.mxu0 0.0
        %687 = vmatpush1.msra.mxu0 0.0
        %688 = vmatprep.subr.mxu0 0.0
        %689 = vmatpush1.msra.mxu0 0.0
        %690 = vmatprep.subr.mxu0 0.0
        %691 = vmatpush1.msra.mxu0 0.0
        %692 = vmatprep.subr.mxu0 0.0
        %693 = vmatpush1.msra.mxu0 0.0
        %694 = vmatprep.subr.mxu0 0.0
        %695 = vmatpush1.msra.mxu0 0.0
        %696 = vmatprep.subr.mxu0 0.0
        %697 = vmatpush1.msra.mxu0 0.0
        %698 = vmatprep.subr.mxu0 0.0
        %699 = vmatpush1.msra.mxu0 0.0
        %700 = vmatprep.subr.mxu0 0.0
        %701 = vmatpush1.msra.mxu0 0.0
        %702 = vmatprep.subr.mxu0 0.0
        %703 = vmatpush1.msra.mxu0 0.0
        %704 = vmatprep.subr.mxu0 0.0
        %705 = vmatpush1.msra.mxu0 0.0
        %706 = vmatprep.subr.mxu0 0.0
        %707 = vmatpush1.msra.mxu0 0.0
        %708 = vmatprep.subr.mxu0 0.0
        %709 = vmatpush1.msra.mxu0 0.0
        %710 = vmatprep.subr.mxu0 0.0
        %711 = vmatpush1.msra.mxu0 0.0
        %712 = vmatprep.subr.mxu0 0.0
        %713 = vmatpush1.msra.mxu0 0.0
        %714 = vmatprep.subr.mxu0 0.0
        %715 = vmatpush1.msra.mxu0 0.0
        %716 = vmatprep.subr.mxu0 0.0
        %717 = vmatpush1.msra.mxu0 %v679
        %718 = vmatprep.subr.mxu0 0.0
        %719 = vmatpush2.msra.mxu0 0.0
        %720 = vmatprep.subr.mxu0 0.0
        %721 = vmatpush2.msra.mxu0 0.0
        %722 = vmatprep.subr.mxu0 0.0
        %723 = vmatpush2.msra.mxu0 0.0
        %724 = vmatprep.subr.mxu0 0.0
        %725 = vmatpush2.msra.mxu0 0.0
        %726 = vmatprep.subr.mxu0 0.0
        %727 = vmatpush2.msra.mxu0 0.0
        %728 = vmatprep.subr.mxu0 0.0
        %729 = vmatpush2.msra.mxu0 0.0
        %730 = vmatprep.subr.mxu0 0.0
        %731 = vmatpush2.msra.mxu0 0.0
        %732 = vmatprep.subr.mxu0 0.0
        %733 = vmatpush2.msra.mxu0 0.0
        %734 = vmatprep.subr.mxu0 0.0
        %735 = vmatpush2.msra.mxu0 0.0
        %736 = vmatprep.subr.mxu0 0.0
        %737 = vmatpush2.msra.mxu0 0.0
        %738 = vmatprep.subr.mxu0 0.0
        %739 = vmatpush2.msra.mxu0 0.0
        %740 = vmatprep.subr.mxu0 0.0
        %741 = vmatpush2.msra.mxu0 0.0
        %742 = vmatprep.subr.mxu0 0.0
        %743 = vmatpush2.msra.mxu0 0.0
        %744 = vmatprep.subr.mxu0 0.0
        %745 = vmatpush2.msra.mxu0 0.0
        %746 = vmatprep.subr.mxu0 0.0
        %747 = vmatpush2.msra.mxu0 0.0
        %748 = vmatprep.subr.mxu0 0.0
        %749 = vmatpush2.msra.mxu0 0.0
        %750 = vmatprep.mubr.f32.mxu0 0.0
        %751 = vmatmul.mubr.f32.gmra.mxu0 %v681
        %v752 = vpop.f32.mrf.mxu0
        %v753 = vadd.f32 0.0, %v752
        %v754 = vpop.f32.mrf.mxu0
        %755 = vmatprep.mubr.f32.mxu0 0.0
        %756 = vmatmul.mubr.f32.gmra.mxu0 %v684
        %v757 = vpop.f32.mrf.mxu0
        %v758 = vadd.f32 0.0, %v757
        %v759 = vpop.f32.mrf.mxu0
        %760 = vdwg.mxu0
        %v761 = vadd.f32 %v677, %v753
        %v762 = vadd.f32 %v678, %v758
        %763 = vst.msk [vmem:[#allocation2] sm:$0xff] %vm398, %v761
        %764 = vst.msk [vmem:[#allocation2 + $0x8] sm:$0xff] %vm398, %v762
        %765 = vrot.lane.b32.xlu0 %v472, 120
        %v766 = vpop.permute.xlu0 %765
        %767 = vrot.lane.b32.xlu0 %v477, 120
        %v768 = vpop.permute.xlu0 %767
        %769 = vrot.lane.b32.xlu0 %v392, 120
        %v770 = vpop.permute.xlu0 %769
        %v771 = vsel %vm489, %v766, 0
        %v773 = vsel %vm489, %v768, 0
        %v775 = vsel %vm489, %v770, 0
        %777 = vmatprep.subr.mxu0 0.0
        %778 = vmatpush1.xpose.msra.mxu0 0.0
        %779 = vmatprep.subr.mxu0 0.0
        %780 = vmatpush1.xpose.msra.mxu0 0.0
        %781 = vmatprep.subr.mxu0 0.0
        %782 = vmatpush1.xpose.msra.mxu0 0.0
        %783 = vmatprep.subr.mxu0 0.0
        %784 = vmatpush1.xpose.msra.mxu0 0.0
        %785 = vmatprep.subr.mxu0 0.0
        %786 = vmatpush1.xpose.msra.mxu0 0.0
        %787 = vmatprep.subr.mxu0 0.0
        %788 = vmatpush1.xpose.msra.mxu0 0.0
        %789 = vmatprep.subr.mxu0 0.0
        %790 = vmatpush1.xpose.msra.mxu0 0.0
        %791 = vmatprep.subr.mxu0 0.0
        %792 = vmatpush1.xpose.msra.mxu0 0.0
        %793 = vmatprep.subr.mxu0 0.0
        %794 = vmatpush1.xpose.msra.mxu0 0.0
        %795 = vmatprep.subr.mxu0 0.0
        %796 = vmatpush1.xpose.msra.mxu0 0.0
        %797 = vmatprep.subr.mxu0 0.0
        %798 = vmatpush1.xpose.msra.mxu0 0.0
        %799 = vmatprep.subr.mxu0 0.0
        %800 = vmatpush1.xpose.msra.mxu0 0.0
        %801 = vmatprep.subr.mxu0 0.0
        %802 = vmatpush1.xpose.msra.mxu0 0.0
        %803 = vmatprep.subr.mxu0 0.0
        %804 = vmatpush1.xpose.msra.mxu0 0.0
        %805 = vmatprep.subr.mxu0 0.0
        %806 = vmatpush1.xpose.msra.mxu0 0.0
        %807 = vmatprep.subr.mxu0 0.0
        %808 = vmatpush1.xpose.msra.mxu0 %v775
        %809 = vmatprep.subr.mxu0 0.0
        %810 = vmatpush2.xpose.msra.mxu0 0.0
        %811 = vmatprep.subr.mxu0 0.0
        %812 = vmatpush2.xpose.msra.mxu0 0.0
        %813 = vmatprep.subr.mxu0 0.0
        %814 = vmatpush2.xpose.msra.mxu0 0.0
        %815 = vmatprep.subr.mxu0 0.0
        %816 = vmatpush2.xpose.msra.mxu0 0.0
        %817 = vmatprep.subr.mxu0 0.0
        %818 = vmatpush2.xpose.msra.mxu0 0.0
        %819 = vmatprep.subr.mxu0 0.0
        %820 = vmatpush2.xpose.msra.mxu0 0.0
        %821 = vmatprep.subr.mxu0 0.0
        %822 = vmatpush2.xpose.msra.mxu0 0.0
        %823 = vmatprep.subr.mxu0 0.0
        %824 = vmatpush2.xpose.msra.mxu0 0.0
        %825 = vmatprep.subr.mxu0 0.0
        %826 = vmatpush2.xpose.msra.mxu0 0.0
        %827 = vmatprep.subr.mxu0 0.0
        %828 = vmatpush2.xpose.msra.mxu0 0.0
        %829 = vmatprep.subr.mxu0 0.0
        %830 = vmatpush2.xpose.msra.mxu0 0.0
        %831 = vmatprep.subr.mxu0 0.0
        %832 = vmatpush2.xpose.msra.mxu0 0.0
        %833 = vmatprep.subr.mxu0 0.0
        %834 = vmatpush2.xpose.msra.mxu0 0.0
        %835 = vmatprep.subr.mxu0 0.0
        %836 = vmatpush2.xpose.msra.mxu0 0.0
        %837 = vmatprep.subr.mxu0 0.0
        %838 = vmatpush2.xpose.msra.mxu0 0.0
        %839 = vmatprep.subr.mxu0 0.0
        %840 = vmatpush2.xpose.msra.mxu0 0.0
        %841 = vmatprep.mubr.f32.mxu0 0.0
        %842 = vmatmul.mubr.f32.gmra.mxu0 %v771
        %v843 = vpop.f32.mrf.mxu0
        %v844 = vadd.f32 0.0, %v843
        %v845 = vpop.f32.mrf.mxu0
        %846 = vmatprep.mubr.f32.mxu0 0.0
        %847 = vmatmul.mubr.f32.gmra.mxu0 %v773
        %v848 = vpop.f32.mrf.mxu0
        %v849 = vadd.f32 0.0, %v848
        %v850 = vpop.f32.mrf.mxu0
        %851 = vdwg.mxu0
        %v852 = vsel %vm489, %v844, -inf
        %853 = vmax.xlane.f32.xlu0 %v852
        %v854 = vpop.xlane.xlu0 %853
        %v855 = vsel %vm489, %v849, -inf
        %856 = vmax.xlane.f32.xlu0 %v855
        %v857 = vpop.xlane.xlu0 %856
        %v858 = vsub.f32 %v844, %v854
        %v859 = vsub.f32 %v849, %v857
        %v860 = vmul.f32 %v858, 1.442695
        %v861 = vpow.pop %v860
        %v862 = vmul.f32 %v859, 1.442695
        %v863 = vpow.pop %v862
        %v864 = vsel %vm489, %v861, 0.0
        %865 = vadd.xlane.f32.xlu0 %v864
        %v866 = vpop.xlane.xlu0 %865
        %v867 = vsel %vm489, %v863, 0.0
        %868 = vadd.xlane.f32.xlu0 %v867
        %v869 = vpop.xlane.xlu0 %868
        %871 = vrot.lane.b32.xlu0 %v393, 120
        %v872 = vpop.permute.xlu0 %871
        %v875 = vsel %vm489, %v861, 0
        %v878 = vsel %vm489, %v863, 0
        %880 = vmatprep.subr.mxu0 0.0
        %881 = vmatpush1.msra.mxu0 0.0
        %882 = vmatprep.subr.mxu0 0.0
        %883 = vmatpush1.msra.mxu0 0.0
        %884 = vmatprep.subr.mxu0 0.0
        %885 = vmatpush1.msra.mxu0 0.0
        %886 = vmatprep.subr.mxu0 0.0
        %887 = vmatpush1.msra.mxu0 0.0
        %888 = vmatprep.subr.mxu0 0.0
        %889 = vmatpush1.msra.mxu0 0.0
        %890 = vmatprep.subr.mxu0 0.0
        %891 = vmatpush1.msra.mxu0 0.0
        %892 = vmatprep.subr.mxu0 0.0
        %893 = vmatpush1.msra.mxu0 0.0
        %894 = vmatprep.subr.mxu0 0.0
        %895 = vmatpush1.msra.mxu0 0.0
        %896 = vmatprep.subr.mxu0 0.0
        %897 = vmatpush1.msra.mxu0 0.0
        %898 = vmatprep.subr.mxu0 0.0
        %899 = vmatpush1.msra.mxu0 0.0
        %900 = vmatprep.subr.mxu0 0.0
        %901 = vmatpush1.msra.mxu0 0.0
        %902 = vmatprep.subr.mxu0 0.0
        %903 = vmatpush1.msra.mxu0 0.0
        %904 = vmatprep.subr.mxu0 0.0
        %905 = vmatpush1.msra.mxu0 0.0
        %906 = vmatprep.subr.mxu0 0.0
        %907 = vmatpush1.msra.mxu0 0.0
        %908 = vmatprep.subr.mxu0 0.0
        %909 = vmatpush1.msra.mxu0 0.0
        %910 = vmatprep.subr.mxu0 0.0
        %911 = vmatpush1.msra.mxu0 %v872
        %912 = vmatprep.subr.mxu0 0.0
        %913 = vmatpush2.msra.mxu0 0.0
        %914 = vmatprep.subr.mxu0 0.0
        %915 = vmatpush2.msra.mxu0 0.0
        %916 = vmatprep.subr.mxu0 0.0
        %917 = vmatpush2.msra.mxu0 0.0
        %918 = vmatprep.subr.mxu0 0.0
        %919 = vmatpush2.msra.mxu0 0.0
        %920 = vmatprep.subr.mxu0 0.0
        %921 = vmatpush2.msra.mxu0 0.0
        %922 = vmatprep.subr.mxu0 0.0
        %923 = vmatpush2.msra.mxu0 0.0
        %924 = vmatprep.subr.mxu0 0.0
        %925 = vmatpush2.msra.mxu0 0.0
        %926 = vmatprep.subr.mxu0 0.0
        %927 = vmatpush2.msra.mxu0 0.0
        %928 = vmatprep.subr.mxu0 0.0
        %929 = vmatpush2.msra.mxu0 0.0
        %930 = vmatprep.subr.mxu0 0.0
        %931 = vmatpush2.msra.mxu0 0.0
        %932 = vmatprep.subr.mxu0 0.0
        %933 = vmatpush2.msra.mxu0 0.0
        %934 = vmatprep.subr.mxu0 0.0
        %935 = vmatpush2.msra.mxu0 0.0
        %936 = vmatprep.subr.mxu0 0.0
        %937 = vmatpush2.msra.mxu0 0.0
        %938 = vmatprep.subr.mxu0 0.0
        %939 = vmatpush2.msra.mxu0 0.0
        %940 = vmatprep.subr.mxu0 0.0
        %941 = vmatpush2.msra.mxu0 0.0
        %942 = vmatprep.subr.mxu0 0.0
        %943 = vmatpush2.msra.mxu0 0.0
        %944 = vmatprep.mubr.f32.mxu0 0.0
        %945 = vmatmul.mubr.f32.gmra.mxu0 %v875
        %v946 = vpop.f32.mrf.mxu0
        %v947 = vadd.f32 0.0, %v946
        %v948 = vpop.f32.mrf.mxu0
        %949 = vmatprep.mubr.f32.mxu0 0.0
        %950 = vmatmul.mubr.f32.gmra.mxu0 %v878
        %v951 = vpop.f32.mrf.mxu0
        %v952 = vadd.f32 0.0, %v951
        %v953 = vpop.f32.mrf.mxu0
        %954 = vdwg.mxu0
        %v955 = vrcp.pop %v866
        %v956 = vrcp.pop %v869
        %v957 = vmul.f32 %v947, %v955
        %v958 = vmul.f32 %v952, %v956
        %v959 = vld [vmem:[#allocation2] sm:$0xff]
        %v960 = vld [vmem:[#allocation2 + $0x8] sm:$0xff]
        %v961 = vld [vmem:[#allocation11 + $0x8] sm:$0xff]
        %v963 = vsel %vm489, %v957, 0
        %v966 = vsel %vm489, %v958, 0
        %968 = vmatprep.subr.mxu0 0.0
        %969 = vmatpush1.msra.mxu0 0.0
        %970 = vmatprep.subr.mxu0 0.0
        %971 = vmatpush1.msra.mxu0 0.0
        %972 = vmatprep.subr.mxu0 0.0
        %973 = vmatpush1.msra.mxu0 0.0
        %974 = vmatprep.subr.mxu0 0.0
        %975 = vmatpush1.msra.mxu0 0.0
        %976 = vmatprep.subr.mxu0 0.0
        %977 = vmatpush1.msra.mxu0 0.0
        %978 = vmatprep.subr.mxu0 0.0
        %979 = vmatpush1.msra.mxu0 0.0
        %980 = vmatprep.subr.mxu0 0.0
        %981 = vmatpush1.msra.mxu0 0.0
        %982 = vmatprep.subr.mxu0 0.0
        %983 = vmatpush1.msra.mxu0 0.0
        %984 = vmatprep.subr.mxu0 0.0
        %985 = vmatpush1.msra.mxu0 0.0
        %986 = vmatprep.subr.mxu0 0.0
        %987 = vmatpush1.msra.mxu0 0.0
        %988 = vmatprep.subr.mxu0 0.0
        %989 = vmatpush1.msra.mxu0 0.0
        %990 = vmatprep.subr.mxu0 0.0
        %991 = vmatpush1.msra.mxu0 0.0
        %992 = vmatprep.subr.mxu0 0.0
        %993 = vmatpush1.msra.mxu0 0.0
        %994 = vmatprep.subr.mxu0 0.0
        %995 = vmatpush1.msra.mxu0 0.0
        %996 = vmatprep.subr.mxu0 0.0
        %997 = vmatpush1.msra.mxu0 0.0
        %998 = vmatprep.subr.mxu0 0.0
        %999 = vmatpush1.msra.mxu0 %v961
        %1000 = vmatprep.subr.mxu0 0.0
        %1001 = vmatpush2.msra.mxu0 0.0
        %1002 = vmatprep.subr.mxu0 0.0
        %1003 = vmatpush2.msra.mxu0 0.0
        %1004 = vmatprep.subr.mxu0 0.0
        %1005 = vmatpush2.msra.mxu0 0.0
        %1006 = vmatprep.subr.mxu0 0.0
        %1007 = vmatpush2.msra.mxu0 0.0
        %1008 = vmatprep.subr.mxu0 0.0
        %1009 = vmatpush2.msra.mxu0 0.0
        %1010 = vmatprep.subr.mxu0 0.0
        %1011 = vmatpush2.msra.mxu0 0.0
        %1012 = vmatprep.subr.mxu0 0.0
        %1013 = vmatpush2.msra.mxu0 0.0
        %1014 = vmatprep.subr.mxu0 0.0
        %1015 = vmatpush2.msra.mxu0 0.0
        %1016 = vmatprep.subr.mxu0 0.0
        %1017 = vmatpush2.msra.mxu0 0.0
        %1018 = vmatprep.subr.mxu0 0.0
        %1019 = vmatpush2.msra.mxu0 0.0
        %1020 = vmatprep.subr.mxu0 0.0
        %1021 = vmatpush2.msra.mxu0 0.0
        %1022 = vmatprep.subr.mxu0 0.0
        %1023 = vmatpush2.msra.mxu0 0.0
        %1024 = vmatprep.subr.mxu0 0.0
        %1025 = vmatpush2.msra.mxu0 0.0
        %1026 = vmatprep.subr.mxu0 0.0
        %1027 = vmatpush2.msra.mxu0 0.0
        %1028 = vmatprep.subr.mxu0 0.0
        %1029 = vmatpush2.msra.mxu0 0.0
        %1030 = vmatprep.subr.mxu0 0.0
        %1031 = vmatpush2.msra.mxu0 0.0
        %1032 = vmatprep.mubr.f32.mxu0 0.0
        %1033 = vmatmul.mubr.f32.gmra.mxu0 %v963
        %v1034 = vpop.f32.mrf.mxu0
        %v1035 = vadd.f32 0.0, %v1034
        %v1036 = vpop.f32.mrf.mxu0
        %1037 = vmatprep.mubr.f32.mxu0 0.0
        %1038 = vmatmul.mubr.f32.gmra.mxu0 %v966
        %v1039 = vpop.f32.mrf.mxu0
        %v1040 = vadd.f32 0.0, %v1039
        %v1041 = vpop.f32.mrf.mxu0
        %1042 = vdwg.mxu0
        %v1043 = vadd.f32 %v959, %v1035
        %v1044 = vadd.f32 %v960, %v1040
        %1045 = vst.msk [vmem:[#allocation2] sm:$0xff] %vm398, %v1043
        %1046 = vst.msk [vmem:[#allocation2 + $0x8] sm:$0xff] %vm398, %v1044
        %1047 = vrot.lane.b32.xlu0 %v472, 112
        %v1048 = vpop.permute.xlu0 %1047
        %1049 = vrot.lane.b32.xlu0 %v477, 112
        %v1050 = vpop.permute.xlu0 %1049
        %1051 = vrot.lane.b32.xlu0 %v392, 112
        %v1052 = vpop.permute.xlu0 %1051
        %v1053 = vsel %vm489, %v1048, 0
        %v1055 = vsel %vm489, %v1050, 0
        %v1057 = vsel %vm489, %v1052, 0
        %1059 = vmatprep.subr.mxu0 0.0
        %1060 = vmatpush1.xpose.msra.mxu0 0.0
        %1061 = vmatprep.subr.mxu0 0.0
        %1062 = vmatpush1.xpose.msra.mxu0 0.0
        %1063 = vmatprep.subr.mxu0 0.0
        %1064 = vmatpush1.xpose.msra.mxu0 0.0
        %1065 = vmatprep.subr.mxu0 0.0
        %1066 = vmatpush1.xpose.msra.mxu0 0.0
        %1067 = vmatprep.subr.mxu0 0.0
        %1068 = vmatpush1.xpose.msra.mxu0 0.0
        %1069 = vmatprep.subr.mxu0 0.0
        %1070 = vmatpush1.xpose.msra.mxu0 0.0
        %1071 = vmatprep.subr.mxu0 0.0
        %1072 = vmatpush1.xpose.msra.mxu0 0.0
        %1073 = vmatprep.subr.mxu0 0.0
        %1074 = vmatpush1.xpose.msra.mxu0 0.0
        %1075 = vmatprep.subr.mxu0 0.0
        %1076 = vmatpush1.xpose.msra.mxu0 0.0
        %1077 = vmatprep.subr.mxu0 0.0
        %1078 = vmatpush1.xpose.msra.mxu0 0.0
        %1079 = vmatprep.subr.mxu0 0.0
        %1080 = vmatpush1.xpose.msra.mxu0 0.0
        %1081 = vmatprep.subr.mxu0 0.0
        %1082 = vmatpush1.xpose.msra.mxu0 0.0
        %1083 = vmatprep.subr.mxu0 0.0
        %1084 = vmatpush1.xpose.msra.mxu0 0.0
        %1085 = vmatprep.subr.mxu0 0.0
        %1086 = vmatpush1.xpose.msra.mxu0 0.0
        %1087 = vmatprep.subr.mxu0 0.0
        %1088 = vmatpush1.xpose.msra.mxu0 0.0
        %1089 = vmatprep.subr.mxu0 0.0
        %1090 = vmatpush1.xpose.msra.mxu0 %v1057
        %1091 = vmatprep.subr.mxu0 0.0
        %1092 = vmatpush2.xpose.msra.mxu0 0.0
        %1093 = vmatprep.subr.mxu0 0.0
        %1094 = vmatpush2.xpose.msra.mxu0 0.0
        %1095 = vmatprep.subr.mxu0 0.0
        %1096 = vmatpush2.xpose.msra.mxu0 0.0
        %1097 = vmatprep.subr.mxu0 0.0
        %1098 = vmatpush2.xpose.msra.mxu0 0.0
        %1099 = vmatprep.subr.mxu0 0.0
        %1100 = vmatpush2.xpose.msra.mxu0 0.0
        %1101 = vmatprep.subr.mxu0 0.0
        %1102 = vmatpush2.xpose.msra.mxu0 0.0
        %1103 = vmatprep.subr.mxu0 0.0
        %1104 = vmatpush2.xpose.msra.mxu0 0.0
        %1105 = vmatprep.subr.mxu0 0.0
        %1106 = vmatpush2.xpose.msra.mxu0 0.0
        %1107 = vmatprep.subr.mxu0 0.0
        %1108 = vmatpush2.xpose.msra.mxu0 0.0
        %1109 = vmatprep.subr.mxu0 0.0
        %1110 = vmatpush2.xpose.msra.mxu0 0.0
        %1111 = vmatprep.subr.mxu0 0.0
        %1112 = vmatpush2.xpose.msra.mxu0 0.0
        %1113 = vmatprep.subr.mxu0 0.0
        %1114 = vmatpush2.xpose.msra.mxu0 0.0
        %1115 = vmatprep.subr.mxu0 0.0
        %1116 = vmatpush2.xpose.msra.mxu0 0.0
        %1117 = vmatprep.subr.mxu0 0.0
        %1118 = vmatpush2.xpose.msra.mxu0 0.0
        %1119 = vmatprep.subr.mxu0 0.0
        %1120 = vmatpush2.xpose.msra.mxu0 0.0
        %1121 = vmatprep.subr.mxu0 0.0
        %1122 = vmatpush2.xpose.msra.mxu0 0.0
        %1123 = vmatprep.mubr.f32.mxu0 0.0
        %1124 = vmatmul.mubr.f32.gmra.mxu0 %v1053
        %v1125 = vpop.f32.mrf.mxu0
        %v1126 = vadd.f32 0.0, %v1125
        %v1127 = vpop.f32.mrf.mxu0
        %1128 = vmatprep.mubr.f32.mxu0 0.0
        %1129 = vmatmul.mubr.f32.gmra.mxu0 %v1055
        %v1130 = vpop.f32.mrf.mxu0
        %v1131 = vadd.f32 0.0, %v1130
        %v1132 = vpop.f32.mrf.mxu0
        %1133 = vdwg.mxu0
        %v1134 = vsel %vm489, %v1126, -inf
        %1135 = vmax.xlane.f32.xlu0 %v1134
        %v1136 = vpop.xlane.xlu0 %1135
        %v1137 = vsel %vm489, %v1131, -inf
        %1138 = vmax.xlane.f32.xlu0 %v1137
        %v1139 = vpop.xlane.xlu0 %1138
        %v1140 = vsub.f32 %v1126, %v1136
        %v1141 = vsub.f32 %v1131, %v1139
        %v1142 = vmul.f32 %v1140, 1.442695
        %v1143 = vpow.pop %v1142
        %v1144 = vmul.f32 %v1141, 1.442695
        %v1145 = vpow.pop %v1144
        %v1146 = vsel %vm489, %v1143, 0.0
        %1147 = vadd.xlane.f32.xlu0 %v1146
        %v1148 = vpop.xlane.xlu0 %1147
        %v1149 = vsel %vm489, %v1145, 0.0
        %1150 = vadd.xlane.f32.xlu0 %v1149
        %v1151 = vpop.xlane.xlu0 %1150
        %1152 = vrot.lane.b32.xlu0 %v393, 112
        %v1153 = vpop.permute.xlu0 %1152
        %v1156 = vsel %vm489, %v1143, 0
        %v1159 = vsel %vm489, %v1145, 0
        %1161 = vmatprep.subr.mxu0 0.0
        %1162 = vmatpush1.msra.mxu0 0.0
        %1163 = vmatprep.subr.mxu0 0.0
        %1164 = vmatpush1.msra.mxu0 0.0
        %1165 = vmatprep.subr.mxu0 0.0
        %1166 = vmatpush1.msra.mxu0 0.0
        %1167 = vmatprep.subr.mxu0 0.0
        %1168 = vmatpush1.msra.mxu0 0.0
        %1169 = vmatprep.subr.mxu0 0.0
        %1170 = vmatpush1.msra.mxu0 0.0
        %1171 = vmatprep.subr.mxu0 0.0
        %1172 = vmatpush1.msra.mxu0 0.0
        %1173 = vmatprep.subr.mxu0 0.0
        %1174 = vmatpush1.msra.mxu0 0.0
        %1175 = vmatprep.subr.mxu0 0.0
        %1176 = vmatpush1.msra.mxu0 0.0
        %1177 = vmatprep.subr.mxu0 0.0
        %1178 = vmatpush1.msra.mxu0 0.0
        %1179 = vmatprep.subr.mxu0 0.0
        %1180 = vmatpush1.msra.mxu0 0.0
        %1181 = vmatprep.subr.mxu0 0.0
        %1182 = vmatpush1.msra.mxu0 0.0
        %1183 = vmatprep.subr.mxu0 0.0
        %1184 = vmatpush1.msra.mxu0 0.0
        %1185 = vmatprep.subr.mxu0 0.0
        %1186 = vmatpush1.msra.mxu0 0.0
        %1187 = vmatprep.subr.mxu0 0.0
        %1188 = vmatpush1.msra.mxu0 0.0
        %1189 = vmatprep.subr.mxu0 0.0
        %1190 = vmatpush1.msra.mxu0 0.0
        %1191 = vmatprep.subr.mxu0 0.0
        %1192 = vmatpush1.msra.mxu0 %v1153
        %1193 = vmatprep.subr.mxu0 0.0
        %1194 = vmatpush2.msra.mxu0 0.0
        %1195 = vmatprep.subr.mxu0 0.0
        %1196 = vmatpush2.msra.mxu0 0.0
        %1197 = vmatprep.subr.mxu0 0.0
        %1198 = vmatpush2.msra.mxu0 0.0
        %1199 = vmatprep.subr.mxu0 0.0
        %1200 = vmatpush2.msra.mxu0 0.0
        %1201 = vmatprep.subr.mxu0 0.0
        %1202 = vmatpush2.msra.mxu0 0.0
        %1203 = vmatprep.subr.mxu0 0.0
        %1204 = vmatpush2.msra.mxu0 0.0
        %1205 = vmatprep.subr.mxu0 0.0
        %1206 = vmatpush2.msra.mxu0 0.0
        %1207 = vmatprep.subr.mxu0 0.0
        %1208 = vmatpush2.msra.mxu0 0.0
        %1209 = vmatprep.subr.mxu0 0.0
        %1210 = vmatpush2.msra.mxu0 0.0
        %1211 = vmatprep.subr.mxu0 0.0
        %1212 = vmatpush2.msra.mxu0 0.0
        %1213 = vmatprep.subr.mxu0 0.0
        %1214 = vmatpush2.msra.mxu0 0.0
        %1215 = vmatprep.subr.mxu0 0.0
        %1216 = vmatpush2.msra.mxu0 0.0
        %1217 = vmatprep.subr.mxu0 0.0
        %1218 = vmatpush2.msra.mxu0 0.0
        %1219 = vmatprep.subr.mxu0 0.0
        %1220 = vmatpush2.msra.mxu0 0.0
        %1221 = vmatprep.subr.mxu0 0.0
        %1222 = vmatpush2.msra.mxu0 0.0
        %1223 = vmatprep.subr.mxu0 0.0
        %1224 = vmatpush2.msra.mxu0 0.0
        %1225 = vmatprep.mubr.f32.mxu0 0.0
        %1226 = vmatmul.mubr.f32.gmra.mxu0 %v1156
        %v1227 = vpop.f32.mrf.mxu0
        %v1228 = vadd.f32 0.0, %v1227
        %v1229 = vpop.f32.mrf.mxu0
        %1230 = vmatprep.mubr.f32.mxu0 0.0
        %1231 = vmatmul.mubr.f32.gmra.mxu0 %v1159
        %v1232 = vpop.f32.mrf.mxu0
        %v1233 = vadd.f32 0.0, %v1232
        %v1234 = vpop.f32.mrf.mxu0
        %1235 = vdwg.mxu0
        %v1236 = vrcp.pop %v1148
        %v1237 = vrcp.pop %v1151
        %v1238 = vmul.f32 %v1228, %v1236
        %v1239 = vmul.f32 %v1233, %v1237
        %v1240 = vld [vmem:[#allocation2] sm:$0xff]
        %v1241 = vld [vmem:[#allocation2 + $0x8] sm:$0xff]
        %v1242 = vld [vmem:[#allocation11 + $0x10] sm:$0xff]
        %v1244 = vsel %vm489, %v1238, 0
        %v1247 = vsel %vm489, %v1239, 0
        %1249 = vmatprep.subr.mxu0 0.0
        %1250 = vmatpush1.msra.mxu0 0.0
        %1251 = vmatprep.subr.mxu0 0.0
        %1252 = vmatpush1.msra.mxu0 0.0
        %1253 = vmatprep.subr.mxu0 0.0
        %1254 = vmatpush1.msra.mxu0 0.0
        %1255 = vmatprep.subr.mxu0 0.0
        %1256 = vmatpush1.msra.mxu0 0.0
        %1257 = vmatprep.subr.mxu0 0.0
        %1258 = vmatpush1.msra.mxu0 0.0
        %1259 = vmatprep.subr.mxu0 0.0
        %1260 = vmatpush1.msra.mxu0 0.0
        %1261 = vmatprep.subr.mxu0 0.0
        %1262 = vmatpush1.msra.mxu0 0.0
        %1263 = vmatprep.subr.mxu0 0.0
        %1264 = vmatpush1.msra.mxu0 0.0
        %1265 = vmatprep.subr.mxu0 0.0
        %1266 = vmatpush1.msra.mxu0 0.0
        %1267 = vmatprep.subr.mxu0 0.0
        %1268 = vmatpush1.msra.mxu0 0.0
        %1269 = vmatprep.subr.mxu0 0.0
        %1270 = vmatpush1.msra.mxu0 0.0
        %1271 = vmatprep.subr.mxu0 0.0
        %1272 = vmatpush1.msra.mxu0 0.0
        %1273 = vmatprep.subr.mxu0 0.0
        %1274 = vmatpush1.msra.mxu0 0.0
        %1275 = vmatprep.subr.mxu0 0.0
        %1276 = vmatpush1.msra.mxu0 0.0
        %1277 = vmatprep.subr.mxu0 0.0
        %1278 = vmatpush1.msra.mxu0 0.0
        %1279 = vmatprep.subr.mxu0 0.0
        %1280 = vmatpush1.msra.mxu0 %v1242
        %1281 = vmatprep.subr.mxu0 0.0
        %1282 = vmatpush2.msra.mxu0 0.0
        %1283 = vmatprep.subr.mxu0 0.0
        %1284 = vmatpush2.msra.mxu0 0.0
        %1285 = vmatprep.subr.mxu0 0.0
        %1286 = vmatpush2.msra.mxu0 0.0
        %1287 = vmatprep.subr.mxu0 0.0
        %1288 = vmatpush2.msra.mxu0 0.0
        %1289 = vmatprep.subr.mxu0 0.0
        %1290 = vmatpush2.msra.mxu0 0.0
        %1291 = vmatprep.subr.mxu0 0.0
        %1292 = vmatpush2.msra.mxu0 0.0
        %1293 = vmatprep.subr.mxu0 0.0
        %1294 = vmatpush2.msra.mxu0 0.0
        %1295 = vmatprep.subr.mxu0 0.0
        %1296 = vmatpush2.msra.mxu0 0.0
        %1297 = vmatprep.subr.mxu0 0.0
        %1298 = vmatpush2.msra.mxu0 0.0
        %1299 = vmatprep.subr.mxu0 0.0
        %1300 = vmatpush2.msra.mxu0 0.0
        %1301 = vmatprep.subr.mxu0 0.0
        %1302 = vmatpush2.msra.mxu0 0.0
        %1303 = vmatprep.subr.mxu0 0.0
        %1304 = vmatpush2.msra.mxu0 0.0
        %1305 = vmatprep.subr.mxu0 0.0
        %1306 = vmatpush2.msra.mxu0 0.0
        %1307 = vmatprep.subr.mxu0 0.0
        %1308 = vmatpush2.msra.mxu0 0.0
        %1309 = vmatprep.subr.mxu0 0.0
        %1310 = vmatpush2.msra.mxu0 0.0
        %1311 = vmatprep.subr.mxu0 0.0
        %1312 = vmatpush2.msra.mxu0 0.0
        %1313 = vmatprep.mubr.f32.mxu0 0.0
        %1314 = vmatmul.mubr.f32.gmra.mxu0 %v1244
        %v1315 = vpop.f32.mrf.mxu0
        %v1316 = vadd.f32 0.0, %v1315
        %v1317 = vpop.f32.mrf.mxu0
        %1318 = vmatprep.mubr.f32.mxu0 0.0
        %1319 = vmatmul.mubr.f32.gmra.mxu0 %v1247
        %v1320 = vpop.f32.mrf.mxu0
        %v1321 = vadd.f32 0.0, %v1320
        %v1322 = vpop.f32.mrf.mxu0
        %1323 = vdwg.mxu0
        %v1324 = vadd.f32 %v1240, %v1316
        %v1325 = vadd.f32 %v1241, %v1321
        %1326 = vst.msk [vmem:[#allocation2] sm:$0xff] %vm398, %v1324
        %1327 = vst.msk [vmem:[#allocation2 + $0x8] sm:$0xff] %vm398, %v1325
        %1328 = vrot.lane.b32.xlu0 %v472, 104
        %v1329 = vpop.permute.xlu0 %1328
        %1330 = vrot.lane.b32.xlu0 %v477, 104
        %v1331 = vpop.permute.xlu0 %1330
        %1332 = vrot.lane.b32.xlu0 %v392, 104
        %v1333 = vpop.permute.xlu0 %1332
        %v1334 = vsel %vm489, %v1329, 0
        %v1336 = vsel %vm489, %v1331, 0
        %v1338 = vsel %vm489, %v1333, 0
        %1340 = vmatprep.subr.mxu0 0.0
        %1341 = vmatpush1.xpose.msra.mxu0 0.0
        %1342 = vmatprep.subr.mxu0 0.0
        %1343 = vmatpush1.xpose.msra.mxu0 0.0
        %1344 = vmatprep.subr.mxu0 0.0
        %1345 = vmatpush1.xpose.msra.mxu0 0.0
        %1346 = vmatprep.subr.mxu0 0.0
        %1347 = vmatpush1.xpose.msra.mxu0 0.0
        %1348 = vmatprep.subr.mxu0 0.0
        %1349 = vmatpush1.xpose.msra.mxu0 0.0
        %1350 = vmatprep.subr.mxu0 0.0
        %1351 = vmatpush1.xpose.msra.mxu0 0.0
        %1352 = vmatprep.subr.mxu0 0.0
        %1353 = vmatpush1.xpose.msra.mxu0 0.0
        %1354 = vmatprep.subr.mxu0 0.0
        %1355 = vmatpush1.xpose.msra.mxu0 0.0
        %1356 = vmatprep.subr.mxu0 0.0
        %1357 = vmatpush1.xpose.msra.mxu0 0.0
        %1358 = vmatprep.subr.mxu0 0.0
        %1359 = vmatpush1.xpose.msra.mxu0 0.0
        %1360 = vmatprep.subr.mxu0 0.0
        %1361 = vmatpush1.xpose.msra.mxu0 0.0
        %1362 = vmatprep.subr.mxu0 0.0
        %1363 = vmatpush1.xpose.msra.mxu0 0.0
        %1364 = vmatprep.subr.mxu0 0.0
        %1365 = vmatpush1.xpose.msra.mxu0 0.0
        %1366 = vmatprep.subr.mxu0 0.0
        %1367 = vmatpush1.xpose.msra.mxu0 0.0
        %1368 = vmatprep.subr.mxu0 0.0
        %1369 = vmatpush1.xpose.msra.mxu0 0.0
        %1370 = vmatprep.subr.mxu0 0.0
        %1371 = vmatpush1.xpose.msra.mxu0 %v1338
        %1372 = vmatprep.subr.mxu0 0.0
        %1373 = vmatpush2.xpose.msra.mxu0 0.0
        %1374 = vmatprep.subr.mxu0 0.0
        %1375 = vmatpush2.xpose.msra.mxu0 0.0
        %1376 = vmatprep.subr.mxu0 0.0
        %1377 = vmatpush2.xpose.msra.mxu0 0.0
        %1378 = vmatprep.subr.mxu0 0.0
        %1379 = vmatpush2.xpose.msra.mxu0 0.0
        %1380 = vmatprep.subr.mxu0 0.0
        %1381 = vmatpush2.xpose.msra.mxu0 0.0
        %1382 = vmatprep.subr.mxu0 0.0
        %1383 = vmatpush2.xpose.msra.mxu0 0.0
        %1384 = vmatprep.subr.mxu0 0.0
        %1385 = vmatpush2.xpose.msra.mxu0 0.0
        %1386 = vmatprep.subr.mxu0 0.0
        %1387 = vmatpush2.xpose.msra.mxu0 0.0
        %1388 = vmatprep.subr.mxu0 0.0
        %1389 = vmatpush2.xpose.msra.mxu0 0.0
        %1390 = vmatprep.subr.mxu0 0.0
        %1391 = vmatpush2.xpose.msra.mxu0 0.0
        %1392 = vmatprep.subr.mxu0 0.0
        %1393 = vmatpush2.xpose.msra.mxu0 0.0
        %1394 = vmatprep.subr.mxu0 0.0
        %1395 = vmatpush2.xpose.msra.mxu0 0.0
        %1396 = vmatprep.subr.mxu0 0.0
        %1397 = vmatpush2.xpose.msra.mxu0 0.0
        %1398 = vmatprep.subr.mxu0 0.0
        %1399 = vmatpush2.xpose.msra.mxu0 0.0
        %1400 = vmatprep.subr.mxu0 0.0
        %1401 = vmatpush2.xpose.msra.mxu0 0.0
        %1402 = vmatprep.subr.mxu0 0.0
        %1403 = vmatpush2.xpose.msra.mxu0 0.0
        %1404 = vmatprep.mubr.f32.mxu0 0.0
        %1405 = vmatmul.mubr.f32.gmra.mxu0 %v1334
        %v1406 = vpop.f32.mrf.mxu0
        %v1407 = vadd.f32 0.0, %v1406
        %v1408 = vpop.f32.mrf.mxu0
        %1409 = vmatprep.mubr.f32.mxu0 0.0
        %1410 = vmatmul.mubr.f32.gmra.mxu0 %v1336
        %v1411 = vpop.f32.mrf.mxu0
        %v1412 = vadd.f32 0.0, %v1411
        %v1413 = vpop.f32.mrf.mxu0
        %1414 = vdwg.mxu0
        %v1415 = vsel %vm489, %v1407, -inf
        %1416 = vmax.xlane.f32.xlu0 %v1415
        %v1417 = vpop.xlane.xlu0 %1416
        %v1418 = vsel %vm489, %v1412, -inf
        %1419 = vmax.xlane.f32.xlu0 %v1418
        %v1420 = vpop.xlane.xlu0 %1419
        %v1421 = vsub.f32 %v1407, %v1417
        %v1422 = vsub.f32 %v1412, %v1420
        %v1423 = vmul.f32 %v1421, 1.442695
        %v1424 = vpow.pop %v1423
        %v1425 = vmul.f32 %v1422, 1.442695
        %v1426 = vpow.pop %v1425
        %v1427 = vsel %vm489, %v1424, 0.0
        %1428 = vadd.xlane.f32.xlu0 %v1427
        %v1429 = vpop.xlane.xlu0 %1428
        %v1430 = vsel %vm489, %v1426, 0.0
        %1431 = vadd.xlane.f32.xlu0 %v1430
        %v1432 = vpop.xlane.xlu0 %1431
        %1433 = vrot.lane.b32.xlu0 %v393, 104
        %v1434 = vpop.permute.xlu0 %1433
        %v1437 = vsel %vm489, %v1424, 0
        %v1440 = vsel %vm489, %v1426, 0
        %1442 = vmatprep.subr.mxu0 0.0
        %1443 = vmatpush1.msra.mxu0 0.0
        %1444 = vmatprep.subr.mxu0 0.0
        %1445 = vmatpush1.msra.mxu0 0.0
        %1446 = vmatprep.subr.mxu0 0.0
        %1447 = vmatpush1.msra.mxu0 0.0
        %1448 = vmatprep.subr.mxu0 0.0
        %1449 = vmatpush1.msra.mxu0 0.0
        %1450 = vmatprep.subr.mxu0 0.0
        %1451 = vmatpush1.msra.mxu0 0.0
        %1452 = vmatprep.subr.mxu0 0.0
        %1453 = vmatpush1.msra.mxu0 0.0
        %1454 = vmatprep.subr.mxu0 0.0
        %1455 = vmatpush1.msra.mxu0 0.0
        %1456 = vmatprep.subr.mxu0 0.0
        %1457 = vmatpush1.msra.mxu0 0.0
        %1458 = vmatprep.subr.mxu0 0.0
        %1459 = vmatpush1.msra.mxu0 0.0
        %1460 = vmatprep.subr.mxu0 0.0
        %1461 = vmatpush1.msra.mxu0 0.0
        %1462 = vmatprep.subr.mxu0 0.0
        %1463 = vmatpush1.msra.mxu0 0.0
        %1464 = vmatprep.subr.mxu0 0.0
        %1465 = vmatpush1.msra.mxu0 0.0
        %1466 = vmatprep.subr.mxu0 0.0
        %1467 = vmatpush1.msra.mxu0 0.0
        %1468 = vmatprep.subr.mxu0 0.0
        %1469 = vmatpush1.msra.mxu0 0.0
        %1470 = vmatprep.subr.mxu0 0.0
        %1471 = vmatpush1.msra.mxu0 0.0
        %1472 = vmatprep.subr.mxu0 0.0
        %1473 = vmatpush1.msra.mxu0 %v1434
        %1474 = vmatprep.subr.mxu0 0.0
        %1475 = vmatpush2.msra.mxu0 0.0
        %1476 = vmatprep.subr.mxu0 0.0
        %1477 = vmatpush2.msra.mxu0 0.0
        %1478 = vmatprep.subr.mxu0 0.0
        %1479 = vmatpush2.msra.mxu0 0.0
        %1480 = vmatprep.subr.mxu0 0.0
        %1481 = vmatpush2.msra.mxu0 0.0
        %1482 = vmatprep.subr.mxu0 0.0
        %1483 = vmatpush2.msra.mxu0 0.0
        %1484 = vmatprep.subr.mxu0 0.0
        %1485 = vmatpush2.msra.mxu0 0.0
        %1486 = vmatprep.subr.mxu0 0.0
        %1487 = vmatpush2.msra.mxu0 0.0
        %1488 = vmatprep.subr.mxu0 0.0
        %1489 = vmatpush2.msra.mxu0 0.0
        %1490 = vmatprep.subr.mxu0 0.0
        %1491 = vmatpush2.msra.mxu0 0.0
        %1492 = vmatprep.subr.mxu0 0.0
        %1493 = vmatpush2.msra.mxu0 0.0
        %1494 = vmatprep.subr.mxu0 0.0
        %1495 = vmatpush2.msra.mxu0 0.0
        %1496 = vmatprep.subr.mxu0 0.0
        %1497 = vmatpush2.msra.mxu0 0.0
        %1498 = vmatprep.subr.mxu0 0.0
        %1499 = vmatpush2.msra.mxu0 0.0
        %1500 = vmatprep.subr.mxu0 0.0
        %1501 = vmatpush2.msra.mxu0 0.0
        %1502 = vmatprep.subr.mxu0 0.0
        %1503 = vmatpush2.msra.mxu0 0.0
        %1504 = vmatprep.subr.mxu0 0.0
        %1505 = vmatpush2.msra.mxu0 0.0
        %1506 = vmatprep.mubr.f32.mxu0 0.0
        %1507 = vmatmul.mubr.f32.gmra.mxu0 %v1437
        %v1508 = vpop.f32.mrf.mxu0
        %v1509 = vadd.f32 0.0, %v1508
        %v1510 = vpop.f32.mrf.mxu0
        %1511 = vmatprep.mubr.f32.mxu0 0.0
        %1512 = vmatmul.mubr.f32.gmra.mxu0 %v1440
        %v1513 = vpop.f32.mrf.mxu0
        %v1514 = vadd.f32 0.0, %v1513
        %v1515 = vpop.f32.mrf.mxu0
        %1516 = vdwg.mxu0
        %v1517 = vrcp.pop %v1429
        %v1518 = vrcp.pop %v1432
        %v1519 = vmul.f32 %v1509, %v1517
        %v1520 = vmul.f32 %v1514, %v1518
        %v1521 = vld [vmem:[#allocation2] sm:$0xff]
        %v1522 = vld [vmem:[#allocation2 + $0x8] sm:$0xff]
        %v1523 = vld [vmem:[#allocation11 + $0x18] sm:$0xff]
        %v1525 = vsel %vm489, %v1519, 0
        %v1528 = vsel %vm489, %v1520, 0
        %1530 = vmatprep.subr.mxu0 0.0
        %1531 = vmatpush1.msra.mxu0 0.0
        %1532 = vmatprep.subr.mxu0 0.0
        %1533 = vmatpush1.msra.mxu0 0.0
        %1534 = vmatprep.subr.mxu0 0.0
        %1535 = vmatpush1.msra.mxu0 0.0
        %1536 = vmatprep.subr.mxu0 0.0
        %1537 = vmatpush1.msra.mxu0 0.0
        %1538 = vmatprep.subr.mxu0 0.0
        %1539 = vmatpush1.msra.mxu0 0.0
        %1540 = vmatprep.subr.mxu0 0.0
        %1541 = vmatpush1.msra.mxu0 0.0
        %1542 = vmatprep.subr.mxu0 0.0
        %1543 = vmatpush1.msra.mxu0 0.0
        %1544 = vmatprep.subr.mxu0 0.0
        %1545 = vmatpush1.msra.mxu0 0.0
        %1546 = vmatprep.subr.mxu0 0.0
        %1547 = vmatpush1.msra.mxu0 0.0
        %1548 = vmatprep.subr.mxu0 0.0
        %1549 = vmatpush1.msra.mxu0 0.0
        %1550 = vmatprep.subr.mxu0 0.0
        %1551 = vmatpush1.msra.mxu0 0.0
        %1552 = vmatprep.subr.mxu0 0.0
        %1553 = vmatpush1.msra.mxu0 0.0
        %1554 = vmatprep.subr.mxu0 0.0
        %1555 = vmatpush1.msra.mxu0 0.0
        %1556 = vmatprep.subr.mxu0 0.0
        %1557 = vmatpush1.msra.mxu0 0.0
        %1558 = vmatprep.subr.mxu0 0.0
        %1559 = vmatpush1.msra.mxu0 0.0
        %1560 = vmatprep.subr.mxu0 0.0
        %1561 = vmatpush1.msra.mxu0 %v1523
        %1562 = vmatprep.subr.mxu0 0.0
        %1563 = vmatpush2.msra.mxu0 0.0
        %1564 = vmatprep.subr.mxu0 0.0
        %1565 = vmatpush2.msra.mxu0 0.0
        %1566 = vmatprep.subr.mxu0 0.0
        %1567 = vmatpush2.msra.mxu0 0.0
        %1568 = vmatprep.subr.mxu0 0.0
        %1569 = vmatpush2.msra.mxu0 0.0
        %1570 = vmatprep.subr.mxu0 0.0
        %1571 = vmatpush2.msra.mxu0 0.0
        %1572 = vmatprep.subr.mxu0 0.0
        %1573 = vmatpush2.msra.mxu0 0.0
        %1574 = vmatprep.subr.mxu0 0.0
        %1575 = vmatpush2.msra.mxu0 0.0
        %1576 = vmatprep.subr.mxu0 0.0
        %1577 = vmatpush2.msra.mxu0 0.0
        %1578 = vmatprep.subr.mxu0 0.0
        %1579 = vmatpush2.msra.mxu0 0.0
        %1580 = vmatprep.subr.mxu0 0.0
        %1581 = vmatpush2.msra.mxu0 0.0
        %1582 = vmatprep.subr.mxu0 0.0
        %1583 = vmatpush2.msra.mxu0 0.0
        %1584 = vmatprep.subr.mxu0 0.0
        %1585 = vmatpush2.msra.mxu0 0.0
        %1586 = vmatprep.subr.mxu0 0.0
        %1587 = vmatpush2.msra.mxu0 0.0
        %1588 = vmatprep.subr.mxu0 0.0
        %1589 = vmatpush2.msra.mxu0 0.0
        %1590 = vmatprep.subr.mxu0 0.0
        %1591 = vmatpush2.msra.mxu0 0.0
        %1592 = vmatprep.subr.mxu0 0.0
        %1593 = vmatpush2.msra.mxu0 0.0
        %1594 = vmatprep.mubr.f32.mxu0 0.0
        %1595 = vmatmul.mubr.f32.gmra.mxu0 %v1525
        %v1596 = vpop.f32.mrf.mxu0
        %v1597 = vadd.f32 0.0, %v1596
        %v1598 = vpop.f32.mrf.mxu0
        %1599 = vmatprep.mubr.f32.mxu0 0.0
        %1600 = vmatmul.mubr.f32.gmra.mxu0 %v1528
        %v1601 = vpop.f32.mrf.mxu0
        %v1602 = vadd.f32 0.0, %v1601
        %v1603 = vpop.f32.mrf.mxu0
        %1604 = vdwg.mxu0
        %v1605 = vadd.f32 %v1521, %v1597
        %v1606 = vadd.f32 %v1522, %v1602
        %1607 = vst.msk [vmem:[#allocation2] sm:$0xff] %vm398, %v1605
        %1608 = vst.msk [vmem:[#allocation2 + $0x8] sm:$0xff] %vm398, %v1606
        %v1609 = vld [vmem:[#allocation2] sm:$0xff]
        %v1610 = vld [vmem:[#allocation2 + $0x8] sm:$0xff]
        %1611 = vst.msk [vmem:[%s387] sm:$0xff] %vm398, %v1609
        %1612 = vst.msk [vmem:[%s387 + $0x8] sm:$0xff] %vm398, %v1610
        %s1613 = sand.u32 %s192, 1
        %s1614 = scalar_lea.sflag [#allocation5], %s1613
        %s1615 = sand.u32 %s192, 1
        %s1616 = smul.addr %s1615, 16
        %s1617 = scalar_lea.vmem [#allocation12], %s1616
        // Predicated region
        $region65: #{tpu_custom_call.1} parent=43 // pred_check
          %p1618 = pneg %p202
        $region66: #{tpu_custom_call.1} parent=43 // pred_check_branch
          %1620 = sbr.rel (%p1618) target = $region68
        $region67: #{tpu_custom_call.1} parent=43 // pred_region
          %s1621 = smul.u32 2, %s32
          %s1623 = ssub.s32 256, 256
          %1624 = vsyncadd %s1614, %s1623
          %s1625 = smul.addr %s31, 2
          %s1626 = sadd.s32 %s1621, %s1625
          %s1627 = smul.addr %s1626, 128
          %s1628 = scalar_lea.hbm %s6, %s1627
          %s1629 = sshll.u32 %s1617, 4
          %s1630 = int_to_ptr.vmem [resolvable:$true] %s1629
          %1635 = dma.vmem_to_hbm [thread:$0]  %s1630, 256, %s1628, %s1614, 128, 128, 8
        $region68: #{tpu_custom_call.1} parent=43 // pred_fallthru
          _
      $region44: #{tpu_custom_call.1} parent=5 // pred_fallthru
        _
      %p1636 = scmp.le.s32.totalorder 2, %s22
      // Predicated region
      $region69: #{tpu_custom_call.1} parent=5 // pred_check
        %p1637 = pneg %p1636
      $region70: #{tpu_custom_call.1} parent=5 // pred_check_branch
        %1639 = sbr.rel (%p1637) target = $region72
      $region71: #{tpu_custom_call.1} parent=5 // pred_region
        %s1640 = ssub.s32 %s22, 2
        // Predicated region
        $region73: #{tpu_custom_call.1} parent=71 // pred_check
          %p1641 = pneg %p208
        $region74: #{tpu_custom_call.1} parent=71 // pred_check_branch
          %1643 = sbr.rel (%p1641) target = $region76
        $region75: #{tpu_custom_call.1} parent=71 // pred_region
          %s1644 = sand.u32 %s193, 1
          %s1645 = scalar_lea.sflag [#allocation5], %s1644
          %s1646 = sand.u32 %s193, 1
          %s1647 = smul.addr %s1646, 16
          %s1648 = scalar_lea.vmem [#allocation12], %s1647
          %1649 = dma.done %s1645, 256
        $region76: #{tpu_custom_call.1} parent=71 // pred_fallthru
          _
      $region72: #{tpu_custom_call.1} parent=5 // pred_fallthru
        _
    $region6: #{tpu_custom_call.1} parent=1 // loop_footer
      %s26 = sadd.s32 1, %s22
    $region7: #{tpu_custom_call.1} parent=1 // loop_footer_branch
      %21 = sbr.rel target = $region3
    $region8: #{tpu_custom_call.1} parent=1 // loop_exit
      _
    %1650 = vsyncpa [#allocation4], 1
    %s1651 = scalar_lea.sflag [#allocation4], 1
    %1652 = vsyncpa %s1651, 1
    %1653 = vsyncpa [#allocation7], 1
    %s1654 = scalar_lea.sflag [#allocation7], 1
    %1655 = vsyncpa %s1654, 1
    %1656 = vsyncpa [#allocation10], 1
    %1657 = vsyncpa [#allocation5], 1
    %s1658 = scalar_lea.sflag [#allocation5], 1
    %1659 = vsyncpa %s1658, 1

</llo_original>
